<compile_context>
chip_gen: v5e
topology: v5e:2x2
jax: 0.10.0
libtpu: 0.0.40
codegen_flags: <defaults>
</compile_context>

<pallas_src>
import functools

import jax
import jax.numpy as jnp
from jax.experimental import pallas as pl
from jax.experimental.pallas import tpu as pltpu


def _pow_pos(x, p):
    """x ** p for x >= 0 with exact handling of x == 0 (EUP exp/log path)."""
    safe = jnp.maximum(x, 1e-30)
    return jnp.where(x > 0.0, jnp.exp(p * jnp.log(safe)), 0.0)


def _mask_loss_kernel(pred_ref, clean_ref, noisy_ref, erb_ref, pair_ref, o_ref, *,
                      gamma, gamma_pred, powers, factors, f_under,
                      eps, iam_eps, clamp_min, n_valid_rows, row_tile):
    step = pl.program_id(0)
    hi = jax.lax.Precision.HIGHEST

    c = clean_ref[...].astype(jnp.float32)   # (rows, 2F), interleaved re/im
    n = noisy_ref[...].astype(jnp.float32)
    pair = pair_ref[...]                     # (2F, F) 0/1 matrix: pair[2k+j, k] = 1

    # |.|^2 per frequency bin: square on the VPU, pair-sum re/im lanes on the
    # (otherwise idle) MXU -- no wrapper-side de-interleave copies needed.
    c2 = jnp.dot(c * c, pair, precision=hi, preferred_element_type=jnp.float32)
    n2 = jnp.dot(n * n, pair, precision=hi, preferred_element_type=jnp.float32)

    # iam mask: |clean| / (|noisy| + eps), clamped to [0, 1].
    # (A sqrt*rsqrt fusion would drop one EUP op per bin but changes the
    #  epsilon semantics slightly; keep the exact torch formula.)
    mask = jnp.clip(jnp.sqrt(c2) / (jnp.sqrt(n2) + iam_eps), 0.0, 1.0)

    # ERB band aggregation on the MXU (f32 accumulate).
    erb_mask = jnp.dot(mask, erb_ref[...].astype(jnp.float32),
                       precision=hi, preferred_element_type=jnp.float32)
    erb_mask = jnp.maximum(erb_mask, 0.0)

    g_t = _pow_pos(erb_mask, gamma)
    # pred is clamped to eps > 0 first, so no zero-guard `where` is needed.
    g_p = jnp.exp(gamma_pred *
                  jnp.log(jnp.maximum(pred_ref[...].astype(jnp.float32), eps)))

    tmp = (g_t - g_p) ** 2
    if f_under != 1.0:
        tmp = tmp * jnp.where(g_p < g_t, jnp.float32(f_under), jnp.float32(1.0))
    tmp = jnp.maximum(tmp, clamp_min)

    # Zero the rows of a ragged edge block once (before the power terms), so
    # garbage past n_valid_rows never reaches the reduction.
    row_idx = jax.lax.broadcasted_iota(jnp.int32, tmp.shape, 0) + step * row_tile
    tmp = jnp.where(row_idx < n_valid_rows, tmp, 0.0)

    partial = jnp.float32(0.0)
    for power, fct in zip(powers, factors):
        term = tmp
        for _ in range(power // 2 - 1):      # tmp ** (power // 2), unrolled
            term = term * tmp
        partial = partial + jnp.float32(fct) * jnp.sum(term)

    # One independent partial per grid step (row axis can run "parallel" on
    # v7x's two TensorCores); the tiny cross-step sum happens in JAX.
    o_ref[...] = jnp.full(o_ref.shape, partial, dtype=jnp.float32)


def mask_loss(pred, clean, noisy, erb_fb, *,
              gamma=0.6, gamma_pred=None, powers=(2,), factors=(1.0,),
              f_under=1.0, eps=1e-12, factor=1.0, row_tile=1024):
    """Pallas TPU implementation of MaskLoss.forward (mask='iam' path).

    pred:  (B, C, T, Fe)    predicted ERB mask (non-negative)
    clean: (B, C, T, F, 2)  clean spectrum, re/im interleaved in the last dim
    noisy: (B, C, T, F, 2)  noisy spectrum, re/im interleaved in the last dim
    erb_fb: (F, Fe)         ERB filterbank matrix

    bf16 inputs are supported and passed through unchanged (the kernel upcasts
    in VMEM), which halves HBM bytes on this bandwidth-bound kernel.
    """
    if gamma_pred is None:
        gamma_pred = gamma

    fe = pred.shape[-1]
    f = clean.shape[-2]
    assert clean.shape[-1] == 2 and noisy.shape[-1] == 2
    assert erb_fb.shape == (f, fe)

    # Free reshapes only: no de-interleave slices, no padding copies.
    pred2 = pred.reshape(-1, fe)
    clean2 = clean.reshape(-1, 2 * f)
    noisy2 = noisy.reshape(-1, 2 * f)

    n_rows = pred2.shape[0]
    assert clean2.shape[0] == n_rows and noisy2.shape[0] == n_rows

    # Sublane alignment of the narrowest input dtype: 8 (f32), 16 (bf16), 32 (int8).
    itemsize = min(jnp.dtype(pred.dtype).itemsize,
                   jnp.dtype(clean.dtype).itemsize,
                   jnp.dtype(noisy.dtype).itemsize)
    align = {4: 8, 2: 16, 1: 32}.get(int(itemsize), 8)
    row_tile = max(align, (int(row_tile) // align) * align)
    row_tile = min(row_tile, pl.cdiv(n_rows, align) * align)
    n_steps = pl.cdiv(n_rows, row_tile)

    # (2F, F) 0/1 matrix that pair-sums the interleaved (re, im) lanes on the MXU.
    pair = jnp.repeat(jnp.eye(f, dtype=jnp.float32), 2, axis=0)

    kernel = functools.partial(
        _mask_loss_kernel,
        gamma=float(gamma), gamma_pred=float(gamma_pred),
        powers=tuple(int(p) for p in powers),
        factors=tuple(float(x) for x in factors),
        f_under=float(f_under),
        eps=float(eps), iam_eps=1e-10, clamp_min=1e-13,
        n_valid_rows=int(n_rows), row_tile=row_tile)

    partials = pl.pallas_call(
        kernel,
        out_shape=jax.ShapeDtypeStruct((n_steps, 8, 128), jnp.float32),
        grid_spec=pltpu.PrefetchScalarGridSpec(
            num_scalar_prefetch=0,
            grid=(n_steps,),
            in_specs=[pl.BlockSpec((row_tile, fe), lambda i: (i, 0)),
                      pl.BlockSpec((row_tile, 2 * f), lambda i: (i, 0)),
                      pl.BlockSpec((row_tile, 2 * f), lambda i: (i, 0)),
                      pl.BlockSpec((f, fe), lambda i: (0, 0)),
                      pl.BlockSpec((2 * f, f), lambda i: (0, 0))],
            out_specs=pl.BlockSpec((1, 8, 128), lambda i: (i, 0, 0)),
        ),
        compiler_params=pltpu.CompilerParams(
            dimension_semantics=("parallel",),
        ),
    )(pred2, clean2, noisy2, erb_fb, pair)

    n_elems = jnp.float32(n_rows * fe)
    return partials[:, 0, 0].sum(dtype=jnp.float32) * jnp.float32(factor) / n_elems


if __name__ == "__main__":
    key = jax.random.PRNGKey(0)
    k1, k2, k3 = jax.random.split(key, 3)

    # Small shapes; T=33 makes B*C*T = 66 rows so the ragged edge-block path
    # (no wrapper padding, in-kernel row mask) is exercised.
    B, C, T, F, FE = 2, 1, 33, 128, 32

    # Predicted ERB mask (non-negative, as the module asserts).
    pred = jax.random.uniform(k1, (B, C, T, FE), dtype=jnp.float32)
    # Complex STFT-like clean / noisy spectra stored as (..., F, 2) re/im.
    clean = jax.random.normal(k2, (B, C, T, F, 2), dtype=jnp.float32)
    noisy = clean + 0.5 * jax.random.normal(k3, (B, C, T, F, 2), dtype=jnp.float32)

    # Simple normalized rectangular ERB filterbank (F -> FE), like erb_fb().
    width = F // FE
    band = jnp.arange(F) // width
    erb_fb = jax.nn.one_hot(band, FE, dtype=jnp.float32) / width

    # Small row_tile so the test exercises a multi-step, pipelined, ragged grid.
    loss = mask_loss(pred, clean, noisy, erb_fb, row_tile=16)
    jax.block_until_ready(loss)

    # Pure-JAX reference implementing the same torch math.
    def ref_mask_loss(pred, clean, noisy, erb_fb, gamma=0.6, gamma_pred=0.6,
                      powers=(2,), factors=(1.0,), f_under=1.0, factor=1.0,
                      eps=1e-12):
        mag_c = jnp.sqrt(clean[..., 0] ** 2 + clean[..., 1] ** 2)
        mag_n = jnp.sqrt(noisy[..., 0] ** 2 + noisy[..., 1] ** 2)
        mask = jnp.clip(mag_c / (mag_n + 1e-10), 0.0, 1.0)
        g_t = jnp.matmul(mask, erb_fb,
                         precision=jax.lax.Precision.HIGHEST) ** gamma
        g_p = jnp.maximum(pred, eps) ** gamma_pred
        tmp = (g_t - g_p) ** 2
        if f_under != 1.0:
            tmp = tmp * jnp.where(g_p < g_t, f_under, 1.0)
        tmp = jnp.maximum(tmp, 1e-13)
        loss = jnp.float32(0.0)
        for p, fct in zip(powers, factors):
            loss = loss + jnp.mean(tmp ** (p // 2)) * fct * factor
        return loss

    ref = ref_mask_loss(pred, clean, noisy, erb_fb)
    assert jnp.allclose(loss, ref, rtol=1e-4, atol=1e-6), (loss, ref)
    print("KERNEL_OK")
</pallas_src>

<mosaic_0001>
module attributes {stable_mosaic.version = 11 : i64} {
  func.func @_mask_loss_kernel(%arg0: i32, %arg1: memref<16x32xf32, #tpu.memory_space<vmem>>, %arg2: memref<16x256xf32, #tpu.memory_space<vmem>>, %arg3: memref<16x256xf32, #tpu.memory_space<vmem>>, %arg4: memref<128x32xf32, #tpu.memory_space<vmem>>, %arg5: memref<256x128xf32, #tpu.memory_space<vmem>>, %arg6: memref<1x8x128xf32, #tpu.memory_space<vmem>>) attributes {dimension_semantics = [#tpu.dimension_semantics<parallel>], iteration_bounds = array<i64: 5>, scalar_prefetch = 0 : i64, scratch_operands = 0 : i64, tpu.core_type = #tpu.core_type<tc>, window_params = [{transform_indices = @transform_0, window_bounds = array<i64: 16, 32>}, {transform_indices = @transform_1, window_bounds = array<i64: 16, 256>}, {transform_indices = @transform_2, window_bounds = array<i64: 16, 256>}, {pipeline_mode = #tpu.pipeline_mode<synchronous>, transform_indices = @transform_3, window_bounds = array<i64: 128, 32>}, {pipeline_mode = #tpu.pipeline_mode<synchronous>, transform_indices = @transform_4, window_bounds = array<i64: 256, 128>}, {transform_indices = @transform_5, window_bounds = array<i64: 1, 8, 128>}]} {
    %c0 = arith.constant 0 : index
    %c0_0 = arith.constant 0 : index
    %0 = vector.load %arg2[%c0, %c0_0] : memref<16x256xf32, #tpu.memory_space<vmem>>, vector<16x256xf32>
    %c0_1 = arith.constant 0 : index
    %c0_2 = arith.constant 0 : index
    %1 = vector.load %arg3[%c0_1, %c0_2] : memref<16x256xf32, #tpu.memory_space<vmem>>, vector<16x256xf32>
    %c0_3 = arith.constant 0 : index
    %c0_4 = arith.constant 0 : index
    %2 = vector.load %arg5[%c0_3, %c0_4] : memref<256x128xf32, #tpu.memory_space<vmem>>, vector<256x128xf32>
    %3 = arith.mulf %0, %0 : vector<16x256xf32>
    %cst = arith.constant dense<0.000000e+00> : vector<16x128xf32>
    %4 = tpu.matmul %3, %2, %cst {dimension_numbers = #tpu.dot_dimension_numbers<[1], [0], [0], [1], [0, 0, 1, 1], [], []>, precision = #tpu.contract_precision<fp32>} : vector<16x256xf32>, vector<256x128xf32>, vector<16x128xf32> -> vector<16x128xf32>
    %5 = arith.mulf %1, %1 : vector<16x256xf32>
    %cst_5 = arith.constant dense<0.000000e+00> : vector<16x128xf32>
    %6 = tpu.matmul %5, %2, %cst_5 {dimension_numbers = #tpu.dot_dimension_numbers<[1], [0], [0], [1], [0, 0, 1, 1], [], []>, precision = #tpu.contract_precision<fp32>} : vector<16x256xf32>, vector<256x128xf32>, vector<16x128xf32> -> vector<16x128xf32>
    %7 = math.sqrt %4 : vector<16x128xf32>
    %8 = math.sqrt %6 : vector<16x128xf32>
    %cst_6 = arith.constant 1.000000e-10 : f32
    %9 = vector.broadcast %cst_6 : f32 to vector<16x128xf32>
    %10 = arith.addf %8, %9 : vector<16x128xf32>
    %11 = arith.divf %7, %10 : vector<16x128xf32>
    %cst_7 = arith.constant 0.000000e+00 : f32
    %cst_8 = arith.constant 1.000000e+00 : f32
    %12 = vector.broadcast %cst_7 : f32 to vector<16x128xf32>
    %13 = arith.maximumf %12, %11 : vector<16x128xf32>
    %14 = vector.broadcast %cst_8 : f32 to vector<16x128xf32>
    %15 = arith.minimumf %14, %13 : vector<16x128xf32>
    %c0_9 = arith.constant 0 : index
    %c0_10 = arith.constant 0 : index
    %16 = vector.load %arg4[%c0_9, %c0_10] : memref<128x32xf32, #tpu.memory_space<vmem>>, vector<128x32xf32>
    %cst_11 = arith.constant dense<0.000000e+00> : vector<16x32xf32>
    %17 = tpu.matmul %15, %16, %cst_11 {dimension_numbers = #tpu.dot_dimension_numbers<[1], [0], [0], [1], [0, 0, 1, 1], [], []>, precision = #tpu.contract_precision<fp32>} : vector<16x128xf32>, vector<128x32xf32>, vector<16x32xf32> -> vector<16x32xf32>
    %cst_12 = arith.constant 0.000000e+00 : f32
    %18 = vector.broadcast %cst_12 : f32 to vector<16x32xf32>
    %19 = arith.maximumf %17, %18 : vector<16x32xf32>
    %cst_13 = arith.constant 1.000000e-30 : f32
    %20 = vector.broadcast %cst_13 : f32 to vector<16x32xf32>
    %21 = arith.maximumf %19, %20 : vector<16x32xf32>
    %cst_14 = arith.constant 0.000000e+00 : f32
    %22 = vector.broadcast %cst_14 : f32 to vector<16x32xf32>
    %23 = arith.cmpf ogt, %19, %22 : vector<16x32xf32>
    %24 = math.log %21 : vector<16x32xf32>
    %cst_15 = arith.constant 6.000000e-01 : f32
    %25 = vector.broadcast %cst_15 : f32 to vector<16x32xf32>
    %26 = arith.mulf %25, %24 : vector<16x32xf32>
    %27 = math.exp %26 : vector<16x32xf32>
    %cst_16 = arith.constant 0.000000e+00 : f32
    %28 = vector.broadcast %cst_16 : f32 to vector<16x32xf32>
    %29 = arith.select %23, %27, %28 : vector<16x32xi1>, vector<16x32xf32>
    %c0_17 = arith.constant 0 : index
    %c0_18 = arith.constant 0 : index
    %30 = vector.load %arg1[%c0_17, %c0_18] : memref<16x32xf32, #tpu.memory_space<vmem>>, vector<16x32xf32>
    %cst_19 = arith.constant 9.99999996E-13 : f32
    %31 = vector.broadcast %cst_19 : f32 to vector<16x32xf32>
    %32 = arith.maximumf %30, %31 : vector<16x32xf32>
    %33 = math.log %32 : vector<16x32xf32>
    %cst_20 = arith.constant 6.000000e-01 : f32
    %34 = vector.broadcast %cst_20 : f32 to vector<16x32xf32>
    %35 = arith.mulf %34, %33 : vector<16x32xf32>
    %36 = math.exp %35 : vector<16x32xf32>
    %37 = arith.subf %29, %36 : vector<16x32xf32>
    %38 = arith.mulf %37, %37 : vector<16x32xf32>
    %cst_21 = arith.constant 9.99999982E-14 : f32
    %39 = vector.broadcast %cst_21 : f32 to vector<16x32xf32>
    %40 = arith.maximumf %38, %39 : vector<16x32xf32>
    %41 = tpu.iota {dimensions = array<i32: 0>} : vector<16x32xi32>
    %c16_i32 = arith.constant 16 : i32
    %42 = arith.muli %arg0, %c16_i32 : i32
    %43 = vector.broadcast %42 : i32 to vector<16x32xi32>
    %44 = arith.addi %41, %43 : vector<16x32xi32>
    %c66_i32 = arith.constant 66 : i32
    %45 = vector.broadcast %c66_i32 : i32 to vector<16x32xi32>
    %46 = arith.cmpi slt, %44, %45 : vector<16x32xi32>
    %cst_22 = arith.constant 0.000000e+00 : f32
    %47 = vector.broadcast %cst_22 : f32 to vector<16x32xf32>
    %48 = arith.select %46, %40, %47 : vector<16x32xi1>, vector<16x32xf32>
    %49 = vector.shape_cast %48 : vector<16x32xf32> to vector<1x16x32xf32>
    %cst_23 = arith.constant dense<0.000000e+00> : vector<1xf32>
    %50 = vector.multi_reduction <add>, %49, %cst_23 [1, 2] : vector<1x16x32xf32> to vector<1xf32>
    %51 = vector.shape_cast %50 : vector<1xf32> to vector<1x1x1xf32>
    %52 = vector.extract %51[0, 0, 0] : f32 from vector<1x1x1xf32>
    %cst_24 = arith.constant 1.000000e+00 : f32
    %53 = arith.mulf %cst_24, %52 : f32
    %cst_25 = arith.constant 0.000000e+00 : f32
    %54 = arith.addf %cst_25, %53 : f32
    %55 = vector.broadcast %54 : f32 to vector<1x8x128xf32>
    %c0_26 = arith.constant 0 : index
    %c0_27 = arith.constant 0 : index
    %c0_28 = arith.constant 0 : index
    %56 = vector.load %arg6[%c0_26, %c0_27, %c0_28] : memref<1x8x128xf32, #tpu.memory_space<vmem>>, vector<1x8x128xf32>
    tpu.vector_store %arg6[%c0_26, %c0_27, %c0_28], %55 {strides = array<i32>} : memref<1x8x128xf32, #tpu.memory_space<vmem>>, vector<1x8x128xf32>,
    return
  }
  func.func @transform_0(%arg0: i32) -> (i32, i32) {
    %c0_i32 = arith.constant 0 : i32
    %c0_i32_0 = arith.constant 0 : i32
    return %arg0, %c0_i32 : i32, i32
  }
  func.func @transform_1(%arg0: i32) -> (i32, i32) {
    %c0_i32 = arith.constant 0 : i32
    %c0_i32_0 = arith.constant 0 : i32
    return %arg0, %c0_i32 : i32, i32
  }
  func.func @transform_2(%arg0: i32) -> (i32, i32) {
    %c0_i32 = arith.constant 0 : i32
    %c0_i32_0 = arith.constant 0 : i32
    return %arg0, %c0_i32 : i32, i32
  }
  func.func @transform_3(%arg0: i32) -> (i32, i32) {
    %c0_i32 = arith.constant 0 : i32
    %c0_i32_0 = arith.constant 0 : i32
    %c0_i32_1 = arith.constant 0 : i32
    return %c0_i32, %c0_i32_0 : i32, i32
  }
  func.func @transform_4(%arg0: i32) -> (i32, i32) {
    %c0_i32 = arith.constant 0 : i32
    %c0_i32_0 = arith.constant 0 : i32
    %c0_i32_1 = arith.constant 0 : i32
    return %c0_i32, %c0_i32_0 : i32, i32
  }
  func.func @transform_5(%arg0: i32) -> (i32, i32, i32) {
    %c0_i32 = arith.constant 0 : i32
    %c0_i32_0 = arith.constant 0 : i32
    %c0_i32_1 = arith.constant 0 : i32
    return %arg0, %c0_i32, %c0_i32_0 : i32, i32, i32
  }
}

</mosaic_0001>

<llo_original>
// kernel: tpu_custom_call.1
$region0: #{tpu_custom_call.1}
  #allocation0 [shape = 'u32[]', space=smem, size = 0x4, offset = 0x4, fixed_abs, tag = 'smem constant byte address 0x4 - core index']
  #allocation1 [shape = 'u32[72,128]{1,0:T(1,128)}', space=vmem, size = 0x9000, scoped, tag = 'internal scratch']
  %s0 = inlined_call_operand.vmem [shape: f32[66,32], index: 0, kind: input, shape index: {}]
  %s1 = inlined_call_operand.vmem [shape: f32[66,256], index: 1, kind: input, shape index: {}]
  %s2 = inlined_call_operand.hbm [shape: f32[66,256], index: 2, kind: input, shape index: {}]
  %s3 = inlined_call_operand.vmem [shape: f32[128,32], index: 3, kind: input, shape index: {}]
  %s4 = inlined_call_operand.hbm [shape: f32[256,128], index: 4, kind: input, shape index: {}]
  %s5 = inlined_call_operand.hbm [shape: f32[5,8,128], index: 5, kind: output, shape index: {}]
  %s6 = sld [smem:[#allocation0]]
  $region61: #{tpu_custom_call.1} parent=0
    _
  %s8 = ssub.s32 1, %s6
  %s9 = scalar_select 0, %s8, %s6
  $region1: #{tpu_custom_call.1} parent=0
    #allocation2 [shape = 'u8[32768]{0}', space=vmem, size = 0x8000, scoped, tag = 'input window, operand 2']
    #allocation3 [shape = 's32[2]{0}', space=sflag, size = 0x8, scoped, tag = 'scoped memory for tpu_custom_call.1']
    #allocation4 [shape = 's32[2]{0}', space=sflag, size = 0x8, scoped, tag = 'scoped memory for tpu_custom_call.1']
    #allocation5 [shape = 'u8[131072]{0}', space=vmem, size = 0x20000, scoped, tag = 'input window, operand 4, single buffered']
    #allocation6 [shape = 's32[1]{0}', space=sflag, size = 0x4, scoped, tag = 'scoped memory for tpu_custom_call.1']
    #allocation7 [shape = 'u8[8192]{0}', space=vmem, size = 0x2000, scoped, tag = 'output window, operand 0']
    %10 = vsyncpa [#allocation3], 0
    %s11 = scalar_lea.sflag [#allocation3], 1
    %12 = vsyncpa %s11, 0
    %13 = vsyncpa [#allocation6], 0
    %14 = vsyncpa [#allocation4], 0
    %s15 = scalar_lea.sflag [#allocation4], 1
    %16 = vsyncpa %s15, 0
    loop: start=0, step=1, limit=7
    $region2: #{tpu_custom_call.1} parent=1 // loop_pre_header
      _
    $region3: #{tpu_custom_call.1} parent=1 // loop_header
      %s18 = sphi 0, %s22
      %p19 = scmp.ge.s32.totalorder %s18, 7
      %s28 = sphi 0, %s30
      %s31 = sphi 0, %s28
      %s32 = sphi 0, %s31
      %s48 = sphi 0, %s32
      %s54 = sphi 0, %s56
      %s57 = sphi 0, %s54
      %s58 = sphi 0, %s57
      %s74 = sphi 0, %s58
      %s80 = sphi 0, %s82
      %s83 = sphi 0, %s80
      %s84 = sphi 0, %s83
      %s100 = sphi 0, %s84
      %s104 = sphi 0, %s104
      %s106 = sphi 0, %s104
      %s107 = sphi 0, %s106
      %s121 = sphi 0, %s107
      %s125 = sphi 0, %s125
      %s127 = sphi 0, %s125
      %s128 = sphi 0, %s127
      %s142 = sphi 0, %s128
      %s148 = sphi 0, %s150
      %s151 = sphi 0, %s148
      %s152 = sphi 0, %s151
      %s168 = sphi 0, %s152
    $region4: #{tpu_custom_call.1} parent=1 // loop_header_branch
      %21 = sbr.rel (%p19) target = $region8
    $region5: #{tpu_custom_call.1} parent=1 // loop_body
      %s23 = ssub.s32 %s18, 1
      %s24 = ssub.s32 %s18, 2
      %s25 = sadd.s32 %s18, 1
      %s26 = ssub.s32 %s18, %s25
      %p27 = scmp.eq.s32.totalorder %s26, 0
      %s29 = sadd.s32 %s28, 1
      %s30 = scalar_select %p27, %s28, %s29
      %p33 = pneg %p27
      %p34 = scmp.eq.s32.totalorder %s18, 4
      %p35 = por %p33, %p34
      %p36 = scmp.ne.s32.totalorder %s28, %s31
      %p37 = scmp.eq.s32.totalorder %s18, 0
      %p38 = por %p36, %p37
      %p39 = scmp.ne.s32.totalorder %s28, %s31
      %p40 = scmp.eq.s32.totalorder %s23, 4
      %p41 = por %p39, %p40
      %p42 = scmp.ne.s32.totalorder %s31, %s32
      %p43 = scmp.eq.s32.totalorder %s23, 0
      %p44 = por %p42, %p43
      %p45 = scmp.ne.s32.totalorder %s31, %s32
      %p46 = scmp.eq.s32.totalorder %s24, 4
      %p47 = por %p45, %p46
      %p49 = scmp.ne.s32.totalorder %s32, %s48
      %p50 = scmp.eq.s32.totalorder %s24, 0
      %p51 = por %p49, %p50
      %s52 = ssub.s32 %s18, %s25
      %p53 = scmp.eq.s32.totalorder %s52, 0
      %s55 = sadd.s32 %s54, 1
      %s56 = scalar_select %p53, %s54, %s55
      %p59 = pneg %p53
      %p60 = scmp.eq.s32.totalorder %s18, 4
      %p61 = por %p59, %p60
      %p62 = scmp.ne.s32.totalorder %s54, %s57
      %p63 = scmp.eq.s32.totalorder %s18, 0
      %p64 = por %p62, %p63
      %p65 = scmp.ne.s32.totalorder %s54, %s57
      %p66 = scmp.eq.s32.totalorder %s23, 4
      %p67 = por %p65, %p66
      %p68 = scmp.ne.s32.totalorder %s57, %s58
      %p69 = scmp.eq.s32.totalorder %s23, 0
      %p70 = por %p68, %p69
      %p71 = scmp.ne.s32.totalorder %s57, %s58
      %p72 = scmp.eq.s32.totalorder %s24, 4
      %p73 = por %p71, %p72
      %p75 = scmp.ne.s32.totalorder %s58, %s74
      %p76 = scmp.eq.s32.totalorder %s24, 0
      %p77 = por %p75, %p76
      %s78 = ssub.s32 %s18, %s25
      %p79 = scmp.eq.s32.totalorder %s78, 0
      %s81 = sadd.s32 %s80, 1
      %s82 = scalar_select %p79, %s80, %s81
      %p85 = pneg %p79
      %p86 = scmp.eq.s32.totalorder %s18, 4
      %p87 = por %p85, %p86
      %p88 = scmp.ne.s32.totalorder %s80, %s83
      %p89 = scmp.eq.s32.totalorder %s18, 0
      %p90 = por %p88, %p89
      %p91 = scmp.ne.s32.totalorder %s80, %s83
      %p92 = scmp.eq.s32.totalorder %s23, 4
      %p93 = por %p91, %p92
      %p94 = scmp.ne.s32.totalorder %s83, %s84
      %p95 = scmp.eq.s32.totalorder %s23, 0
      %p96 = por %p94, %p95
      %p97 = scmp.ne.s32.totalorder %s83, %s84
      %p98 = scmp.eq.s32.totalorder %s24, 4
      %p99 = por %p97, %p98
      %p101 = scmp.ne.s32.totalorder %s84, %s100
      %p102 = scmp.eq.s32.totalorder %s24, 0
      %p103 = por %p101, %p102
      %s105 = sadd.s32 %s104, 1
      %p108 = scmp.eq.s32.totalorder %s18, 4
      %p109 = scmp.ne.s32.totalorder %s104, %s106
      %p110 = scmp.eq.s32.totalorder %s18, 0
      %p111 = por %p109, %p110
      %p112 = scmp.ne.s32.totalorder %s104, %s106
      %p113 = scmp.eq.s32.totalorder %s23, 4
      %p114 = por %p112, %p113
      %p115 = scmp.ne.s32.totalorder %s106, %s107
      %p116 = scmp.eq.s32.totalorder %s23, 0
      %p117 = por %p115, %p116
      %p118 = scmp.ne.s32.totalorder %s106, %s107
      %p119 = scmp.eq.s32.totalorder %s24, 4
      %p120 = por %p118, %p119
      %p122 = scmp.ne.s32.totalorder %s107, %s121
      %p123 = scmp.eq.s32.totalorder %s24, 0
      %p124 = por %p122, %p123
      %s126 = sadd.s32 %s125, 1
      %p129 = scmp.eq.s32.totalorder %s18, 4
      %p130 = scmp.ne.s32.totalorder %s125, %s127
      %p131 = scmp.eq.s32.totalorder %s18, 0
      %p132 = por %p130, %p131
      %p133 = scmp.ne.s32.totalorder %s125, %s127
      %p134 = scmp.eq.s32.totalorder %s23, 4
      %p135 = por %p133, %p134
      %p136 = scmp.ne.s32.totalorder %s127, %s128
      %p137 = scmp.eq.s32.totalorder %s23, 0
      %p138 = por %p136, %p137
      %p139 = scmp.ne.s32.totalorder %s127, %s128
      %p140 = scmp.eq.s32.totalorder %s24, 4
      %p141 = por %p139, %p140
      %p143 = scmp.ne.s32.totalorder %s128, %s142
      %p144 = scmp.eq.s32.totalorder %s24, 0
      %p145 = por %p143, %p144
      %s146 = ssub.s32 %s18, %s25
      %p147 = scmp.eq.s32.totalorder %s146, 0
      %s149 = sadd.s32 %s148, 1
      %s150 = scalar_select %p147, %s148, %s149
      %p153 = pneg %p147
      %p154 = scmp.eq.s32.totalorder %s18, 4
      %p155 = por %p153, %p154
      %p156 = scmp.ne.s32.totalorder %s148, %s151
      %p157 = scmp.eq.s32.totalorder %s18, 0
      %p158 = por %p156, %p157
      %p159 = scmp.ne.s32.totalorder %s148, %s151
      %p160 = scmp.eq.s32.totalorder %s23, 4
      %p161 = por %p159, %p160
      %p162 = scmp.ne.s32.totalorder %s151, %s152
      %p163 = scmp.eq.s32.totalorder %s23, 0
      %p164 = por %p162, %p163
      %p165 = scmp.ne.s32.totalorder %s151, %s152
      %p166 = scmp.eq.s32.totalorder %s24, 4
      %p167 = por %p165, %p166
      %p169 = scmp.ne.s32.totalorder %s152, %s168
      %p170 = scmp.eq.s32.totalorder %s24, 0
      %p171 = por %p169, %p170
      %p172 = scmp.le.s32.totalorder 1, %s18
      %p173 = scmp.lt.s32.totalorder %s18, 6
      %p174 = pnand %p172, %p173
      %p175 = pneg %p174
      // Predicated region
      $region9: #{tpu_custom_call.1} parent=5 // pred_check
        _
      $region10: #{tpu_custom_call.1} parent=5 // pred_check_branch
        %177 = sbr.rel (%p174) target = $region12
      $region11: #{tpu_custom_call.1} parent=5 // pred_region
        %s178 = ssub.s32 %s18, 1
        // Predicated region
        $region13: #{tpu_custom_call.1} parent=11 // pred_check
          %p179 = pneg %p117
        $region14: #{tpu_custom_call.1} parent=11 // pred_check_branch
          %181 = sbr.rel (%p179) target = $region16
        $region15: #{tpu_custom_call.1} parent=11 // pred_region
          _
        $region16: #{tpu_custom_call.1} parent=11 // pred_fallthru
          _
        // Predicated region
        $region17: #{tpu_custom_call.1} parent=11 // pred_check
          %p182 = pneg %p138
        $region18: #{tpu_custom_call.1} parent=11 // pred_check_branch
          %184 = sbr.rel (%p182) target = $region20
        $region19: #{tpu_custom_call.1} parent=11 // pred_region
          %186 = vsyncadd [#allocation6], 0
          %s187 = sshll.u32 %s4, 4
          %s188 = int_to_ptr.hbm [resolvable:$true] %s187
          %s189 = sshll.u32 [#allocation5], 4
          %s190 = int_to_ptr.vmem [resolvable:$true] %s189
          %195 = dma.hbm_to_vmem [thread:$0]  %s188, 4096, %s190, [#allocation6], 128, 128, 8
        $region20: #{tpu_custom_call.1} parent=11 // pred_fallthru
          _
      $region12: #{tpu_custom_call.1} parent=5 // pred_fallthru
        _
      %p196 = scmp.lt.s32.totalorder %s18, 5
      // Predicated region
      $region21: #{tpu_custom_call.1} parent=5 // pred_check
        %p197 = pneg %p196
      $region22: #{tpu_custom_call.1} parent=5 // pred_check_branch
        %199 = sbr.rel (%p197) target = $region24
      $region23: #{tpu_custom_call.1} parent=5 // pred_region
        // Predicated region
        $region25: #{tpu_custom_call.1} parent=23 // pred_check
          %p200 = pneg %p38
        $region26: #{tpu_custom_call.1} parent=23 // pred_check_branch
          %202 = sbr.rel (%p200) target = $region28
        $region27: #{tpu_custom_call.1} parent=23 // pred_region
          %s203 = smul.u32 2, %s18
          %s204 = ssub.s32 9, %s203
          %p205 = scmp.lt.s32.totalorder %s204, 2
          %s206 = scalar_select %p205, %s204, 2
          %s207 = smul.u32 8, %s206
          %p208 = scmp.lt.s32.totalorder %s203, 8
          %s209 = scalar_select %p208, %s203, 8
          %s210 = smul.addr %s209, 8
          %s211 = scalar_lea.vmem %s0, %s210
          %s212 = smul.u32 2, %s18
          %s213 = ssub.s32 9, %s212
          %p214 = scmp.lt.s32.totalorder %s213, 2
          %s215 = scalar_select %p214, %s213, 2
          %s216 = smul.u32 8, %s215
        $region28: #{tpu_custom_call.1} parent=23 // pred_fallthru
          _
        // Predicated region
        $region29: #{tpu_custom_call.1} parent=23 // pred_check
          %p217 = pneg %p64
        $region30: #{tpu_custom_call.1} parent=23 // pred_check_branch
          %219 = sbr.rel (%p217) target = $region32
        $region31: #{tpu_custom_call.1} parent=23 // pred_region
          %s220 = smul.u32 2, %s18
          %s221 = ssub.s32 9, %s220
          %p222 = scmp.lt.s32.totalorder %s221, 2
          %s223 = scalar_select %p222, %s221, 2
          %s224 = smul.u32 8, %s223
          %s225 = smul.u32 %s224, 2
          %p226 = scmp.lt.s32.totalorder %s220, 8
          %s227 = scalar_select %p226, %s220, 8
          %s228 = smul.addr %s227, 2
          %s229 = smul.addr %s228, 8
          %s230 = scalar_lea.vmem %s1, %s229
          %s231 = smul.u32 2, %s18
          %s232 = ssub.s32 9, %s231
          %p233 = scmp.lt.s32.totalorder %s232, 2
          %s234 = scalar_select %p233, %s232, 2
          %s235 = smul.u32 8, %s234
          %s236 = smul.u32 %s235, 2
        $region32: #{tpu_custom_call.1} parent=23 // pred_fallthru
          _
        // Predicated region
        $region33: #{tpu_custom_call.1} parent=23 // pred_check
          %p237 = pneg %p90
        $region34: #{tpu_custom_call.1} parent=23 // pred_check_branch
          %239 = sbr.rel (%p237) target = $region36
        $region35: #{tpu_custom_call.1} parent=23 // pred_region
          %s240 = sand.u32 %s80, 1
          %s241 = scalar_lea.sflag [#allocation3], %s240
          %s242 = sand.u32 %s80, 1
          %s243 = smul.addr %s242, 32
          %s244 = scalar_lea.vmem [#allocation2], %s243
          %s245 = smul.u32 2, %s18
          %s246 = ssub.s32 9, %s245
          %p247 = scmp.lt.s32.totalorder %s246, 2
          %s248 = scalar_select %p247, %s246, 2
          %s249 = smul.u32 8, %s248
          %s250 = smul.u32 %s249, 2
          %s251 = ssub.s32 32, %s250
          %s252 = sshll.u32 %s251, 4
          %253 = vsyncadd %s241, %s252
          %p254 = scmp.ne.s32.totalorder 0, %s250
          %s255 = smul.addr %s245, 2
          %s256 = smul.addr %s255, 8
          %s257 = scalar_lea.hbm %s2, %s256
          %s258 = smul.u32 16, %s248
          %s259 = sshll.u32 %s257, 4
          %s260 = int_to_ptr.hbm [resolvable:$true] %s259
          %s261 = sshll.u32 %s244, 4
          %s262 = int_to_ptr.vmem [resolvable:$true] %s261
          %s263 = sshll.u32 %s258, 4
          %267 = dma.hbm_to_vmem [thread:$0]  (%p254), %s260, %s263, %s262, %s241, 256, 256, 16
        $region36: #{tpu_custom_call.1} parent=23 // pred_fallthru
          _
      $region24: #{tpu_custom_call.1} parent=5 // pred_fallthru
        _
      %p268 = scmp.le.s32.totalorder 1, %s18
      %p269 = scmp.lt.s32.totalorder %s18, 6
      %p270 = pnand %p268, %p269
      %p271 = pneg %p270
      // Predicated region
      $region37: #{tpu_custom_call.1} parent=5 // pred_check
        _
      $region38: #{tpu_custom_call.1} parent=5 // pred_check_branch
        %273 = sbr.rel (%p270) target = $region40
      $region39: #{tpu_custom_call.1} parent=5 // pred_region
        %s274 = ssub.s32 %s18, 1
        %s275 = sand.u32 %s83, 1
        %s276 = scalar_lea.sflag [#allocation3], %s275
        %s277 = sand.u32 %s83, 1
        %s278 = smul.addr %s277, 32
        %s279 = scalar_lea.vmem [#allocation2], %s278
        // Predicated region
        $region41: #{tpu_custom_call.1} parent=39 // pred_check
          %p280 = pneg %p96
        $region42: #{tpu_custom_call.1} parent=39 // pred_check_branch
          %282 = sbr.rel (%p280) target = $region44
        $region43: #{tpu_custom_call.1} parent=39 // pred_region
          %284 = dma.done %s276, 512
        $region44: #{tpu_custom_call.1} parent=39 // pred_fallthru
          _
        // Predicated region
        $region45: #{tpu_custom_call.1} parent=39 // pred_check
          %p285 = pneg %p138
        $region46: #{tpu_custom_call.1} parent=39 // pred_check_branch
          %287 = sbr.rel (%p285) target = $region48
        $region47: #{tpu_custom_call.1} parent=39 // pred_region
          %289 = dma.done [#allocation6], 4096
        $region48: #{tpu_custom_call.1} parent=39 // pred_fallthru
          _
        %s290 = smul.u32 2, %s23
        %s291 = ssub.s32 9, %s290
        %p292 = scmp.lt.s32.totalorder %s291, 2
        %s293 = scalar_select %p292, %s291, 2
        %s294 = smul.u32 8, %s293
        %p295 = scmp.lt.s32.totalorder %s290, 8
        %s296 = scalar_select %p295, %s290, 8
        %s297 = smul.addr %s296, 8
        %s298 = scalar_lea.vmem %s0, %s297
        %p299 = pneg %p44
        %p300 = pneg %p41
        %s301 = smul.u32 2, %s23
        %s302 = ssub.s32 9, %s301
        %p303 = scmp.lt.s32.totalorder %s302, 2
        %s304 = scalar_select %p303, %s302, 2
        %s305 = smul.u32 8, %s304
        %s306 = smul.u32 %s305, 2
        %p307 = scmp.lt.s32.totalorder %s301, 8
        %s308 = scalar_select %p307, %s301, 8
        %s309 = smul.addr %s308, 2
        %s310 = smul.addr %s309, 8
        %s311 = scalar_lea.vmem %s1, %s310
        %p312 = pneg %p70
        %p313 = pneg %p67
        %s314 = sand.u32 %s83, 1
        %s315 = scalar_lea.sflag [#allocation3], %s314
        %s316 = sand.u32 %s83, 1
        %s317 = smul.addr %s316, 32
        %s318 = scalar_lea.vmem [#allocation2], %s317
        %p319 = pneg %p96
        %p320 = pneg %p93
        %p321 = pneg %p117
        %p322 = pneg %p114
        %p323 = pneg %p138
        %p324 = pneg %p135
        %p325 = pneg %p164
        %p326 = pneg %p161
        %s327 = sand.u32 %s151, 1
        %s328 = scalar_lea.sflag [#allocation4], %s327
        %s329 = sand.u32 %s151, 1
        %s330 = smul.addr %s329, 8
        %s331 = scalar_lea.vmem [#allocation7], %s330
        %s332 = smul.u32 2, %s23
        %s333 = ssub.s32 9, %s332
        %p334 = scmp.lt.s32.totalorder %s333, 2
        %s335 = scalar_select %p334, %s333, 2
        %s336 = smul.u32 8, %s335
        %p337 = scmp.lt.s32.totalorder %s332, 8
        %s338 = scalar_select %p337, %s332, 8
        %s339 = smul.addr %s338, 8
        %s340 = scalar_lea.vmem %s0, %s339
        %s341 = smul.u32 2, %s23
        %s342 = ssub.s32 9, %s341
        %p343 = scmp.lt.s32.totalorder %s342, 2
        %s344 = scalar_select %p343, %s342, 2
        %s345 = smul.u32 8, %s344
        %s346 = smul.u32 2, %s23
        %s347 = ssub.s32 9, %s346
        %p348 = scmp.lt.s32.totalorder %s347, 2
        %s349 = scalar_select %p348, %s347, 2
        %s350 = smul.u32 8, %s349
        %s351 = smul.u32 %s350, 2
        %p352 = scmp.lt.s32.totalorder %s346, 8
        %s353 = scalar_select %p352, %s346, 8
        %s354 = smul.addr %s353, 2
        %s355 = smul.addr %s354, 8
        %s356 = scalar_lea.vmem %s1, %s355
        %s357 = smul.u32 2, %s23
        %s358 = ssub.s32 9, %s357
        %p359 = scmp.lt.s32.totalorder %s358, 2
        %s360 = scalar_select %p359, %s358, 2
        %s361 = smul.u32 8, %s360
        %s362 = smul.u32 %s361, 2
        %s363 = smul.u32 2, %s23
        %s364 = ssub.s32 9, %s363
        %p365 = scmp.lt.s32.totalorder %s364, 2
        %s366 = scalar_select %p365, %s364, 2
        %s367 = smul.u32 8, %s366
        %s368 = smul.u32 %s367, 2
        %v369 = vld [vmem:[%s356] sm:$0xff]
        %v370 = vld [vmem:[%s356 + $0x8] sm:$0xff]
        %v371 = vld [vmem:[%s356 + $0x10] sm:$0xff]
        %v372 = vld [vmem:[%s356 + $0x18] sm:$0xff]
        %v373 = vld [vmem:[%s279] sm:$0xff]
        %v374 = vld [vmem:[%s279 + $0x8] sm:$0xff]
        %v375 = vld [vmem:[%s279 + $0x10] sm:$0xff]
        %v376 = vld [vmem:[%s279 + $0x18] sm:$0xff]
        %v377 = vld [vmem:[#allocation5] sm:$0xff]
        %v378 = vld [vmem:[#allocation5 + $0x8] sm:$0xff]
        %v379 = vld [vmem:[#allocation5 + $0x10] sm:$0xff]
        %v380 = vld [vmem:[#allocation5 + $0x18] sm:$0xff]
        %v381 = vld [vmem:[#allocation5 + $0x20] sm:$0xff]
        %v382 = vld [vmem:[#allocation5 + $0x28] sm:$0xff]
        %v383 = vld [vmem:[#allocation5 + $0x30] sm:$0xff]
        %v384 = vld [vmem:[#allocation5 + $0x38] sm:$0xff]
        %v385 = vld [vmem:[#allocation5 + $0x40] sm:$0xff]
        %v386 = vld [vmem:[#allocation5 + $0x48] sm:$0xff]
        %v387 = vld [vmem:[#allocation5 + $0x50] sm:$0xff]
        %v388 = vld [vmem:[#allocation5 + $0x58] sm:$0xff]
        %v389 = vld [vmem:[#allocation5 + $0x60] sm:$0xff]
        %v390 = vld [vmem:[#allocation5 + $0x68] sm:$0xff]
        %v391 = vld [vmem:[#allocation5 + $0x70] sm:$0xff]
        %v392 = vld [vmem:[#allocation5 + $0x78] sm:$0xff]
        %v393 = vld [vmem:[#allocation5 + $0x80] sm:$0xff]
        %v394 = vld [vmem:[#allocation5 + $0x88] sm:$0xff]
        %v395 = vld [vmem:[#allocation5 + $0x90] sm:$0xff]
        %v396 = vld [vmem:[#allocation5 + $0x98] sm:$0xff]
        %v397 = vld [vmem:[#allocation5 + $0xa0] sm:$0xff]
        %v398 = vld [vmem:[#allocation5 + $0xa8] sm:$0xff]
        %v399 = vld [vmem:[#allocation5 + $0xb0] sm:$0xff]
        %v400 = vld [vmem:[#allocation5 + $0xb8] sm:$0xff]
        %v401 = vld [vmem:[#allocation5 + $0xc0] sm:$0xff]
        %v402 = vld [vmem:[#allocation5 + $0xc8] sm:$0xff]
        %v403 = vld [vmem:[#allocation5 + $0xd0] sm:$0xff]
        %v404 = vld [vmem:[#allocation5 + $0xd8] sm:$0xff]
        %v405 = vld [vmem:[#allocation5 + $0xe0] sm:$0xff]
        %v406 = vld [vmem:[#allocation5 + $0xe8] sm:$0xff]
        %v407 = vld [vmem:[#allocation5 + $0xf0] sm:$0xff]
        %v408 = vld [vmem:[#allocation5 + $0xf8] sm:$0xff]
        %v409 = vmul.f32 %v369, %v369
        %v410 = vmul.f32 %v370, %v370
        %v411 = vmul.f32 %v371, %v371
        %v412 = vmul.f32 %v372, %v372
        %v413 = vand.u32 %v392, 4294901760
        %414 = vmatpush.msra.mxu0 %v413
        %v415 = vand.u32 %v391, 4294901760
        %416 = vmatpush.msra.mxu0 %v415
        %v417 = vand.u32 %v390, 4294901760
        %418 = vmatpush.msra.mxu0 %v417
        %v419 = vand.u32 %v389, 4294901760
        %420 = vmatpush.msra.mxu0 %v419
        %v421 = vand.u32 %v388, 4294901760
        %422 = vmatpush.msra.mxu0 %v421
        %v423 = vand.u32 %v387, 4294901760
        %424 = vmatpush.msra.mxu0 %v423
        %v425 = vand.u32 %v386, 4294901760
        %426 = vmatpush.msra.mxu0 %v425
        %v427 = vand.u32 %v385, 4294901760
        %428 = vmatpush.msra.mxu0 %v427
        %v429 = vand.u32 %v384, 4294901760
        %430 = vmatpush.msra.mxu0 %v429
        %v431 = vand.u32 %v383, 4294901760
        %432 = vmatpush.msra.mxu0 %v431
        %v433 = vand.u32 %v382, 4294901760
        %434 = vmatpush.msra.mxu0 %v433
        %v435 = vand.u32 %v381, 4294901760
        %436 = vmatpush.msra.mxu0 %v435
        %v437 = vand.u32 %v380, 4294901760
        %438 = vmatpush.msra.mxu0 %v437
        %v439 = vand.u32 %v379, 4294901760
        %440 = vmatpush.msra.mxu0 %v439
        %v441 = vand.u32 %v378, 4294901760
        %442 = vmatpush.msra.mxu0 %v441
        %v443 = vand.u32 %v377, 4294901760
        %444 = vmatpush.msra.mxu0 %v443
        %v445 = vand.u32 %v409, 4294901760
        %v446 = vsub.f32 %v409, %v445
        %v447 = vand.u32 %v446, 4294901760
        %v448 = vsub.f32 %v446, %v447
        %v449 = vand.u32 %v448, 4294901760
        %450 = vmatmul.f32.gmra.mxu0 %v449
        %v451 = vpop.f32.mrf.mxu0
        %v452 = vadd.f32 0.0, %v451
        %v453 = vand.u32 %v411, 4294901760
        %v454 = vsub.f32 %v411, %v453
        %v455 = vand.u32 %v454, 4294901760
        %v456 = vsub.f32 %v454, %v455
        %v457 = vand.u32 %v456, 4294901760
        %458 = vmatmul.f32.gmra.mxu0 %v457
        %v459 = vpop.f32.mrf.mxu0
        %v460 = vadd.f32 0.0, %v459
        %461 = vdwg.mxu0
        %v462 = vand.u32 %v392, 4294901760
        %v463 = vsub.f32 %v392, %v462
        %v464 = vand.u32 %v463, 4294901760
        %v465 = vsub.f32 %v463, %v464
        %v466 = vand.u32 %v465, 4294901760
        %467 = vmatpush.msra.mxu0 %v466
        %v468 = vand.u32 %v391, 4294901760
        %v469 = vsub.f32 %v391, %v468
        %v470 = vand.u32 %v469, 4294901760
        %v471 = vsub.f32 %v469, %v470
        %v472 = vand.u32 %v471, 4294901760
        %473 = vmatpush.msra.mxu0 %v472
        %v474 = vand.u32 %v390, 4294901760
        %v475 = vsub.f32 %v390, %v474
        %v476 = vand.u32 %v475, 4294901760
        %v477 = vsub.f32 %v475, %v476
        %v478 = vand.u32 %v477, 4294901760
        %479 = vmatpush.msra.mxu0 %v478
        %v480 = vand.u32 %v389, 4294901760
        %v481 = vsub.f32 %v389, %v480
        %v482 = vand.u32 %v481, 4294901760
        %v483 = vsub.f32 %v481, %v482
        %v484 = vand.u32 %v483, 4294901760
        %485 = vmatpush.msra.mxu0 %v484
        %v486 = vand.u32 %v388, 4294901760
        %v487 = vsub.f32 %v388, %v486
        %v488 = vand.u32 %v487, 4294901760
        %v489 = vsub.f32 %v487, %v488
        %v490 = vand.u32 %v489, 4294901760
        %491 = vmatpush.msra.mxu0 %v490
        %v492 = vand.u32 %v387, 4294901760
        %v493 = vsub.f32 %v387, %v492
        %v494 = vand.u32 %v493, 4294901760
        %v495 = vsub.f32 %v493, %v494
        %v496 = vand.u32 %v495, 4294901760
        %497 = vmatpush.msra.mxu0 %v496
        %v498 = vand.u32 %v386, 4294901760
        %v499 = vsub.f32 %v386, %v498
        %v500 = vand.u32 %v499, 4294901760
        %v501 = vsub.f32 %v499, %v500
        %v502 = vand.u32 %v501, 4294901760
        %503 = vmatpush.msra.mxu0 %v502
        %v504 = vand.u32 %v385, 4294901760
        %v505 = vsub.f32 %v385, %v504
        %v506 = vand.u32 %v505, 4294901760
        %v507 = vsub.f32 %v505, %v506
        %v508 = vand.u32 %v507, 4294901760
        %509 = vmatpush.msra.mxu0 %v508
        %v510 = vand.u32 %v384, 4294901760
        %v511 = vsub.f32 %v384, %v510
        %v512 = vand.u32 %v511, 4294901760
        %v513 = vsub.f32 %v511, %v512
        %v514 = vand.u32 %v513, 4294901760
        %515 = vmatpush.msra.mxu0 %v514
        %v516 = vand.u32 %v383, 4294901760
        %v517 = vsub.f32 %v383, %v516
        %v518 = vand.u32 %v517, 4294901760
        %v519 = vsub.f32 %v517, %v518
        %v520 = vand.u32 %v519, 4294901760
        %521 = vmatpush.msra.mxu0 %v520
        %v522 = vand.u32 %v382, 4294901760
        %v523 = vsub.f32 %v382, %v522
        %v524 = vand.u32 %v523, 4294901760
        %v525 = vsub.f32 %v523, %v524
        %v526 = vand.u32 %v525, 4294901760
        %527 = vmatpush.msra.mxu0 %v526
        %v528 = vand.u32 %v381, 4294901760
        %v529 = vsub.f32 %v381, %v528
        %v530 = vand.u32 %v529, 4294901760
        %v531 = vsub.f32 %v529, %v530
        %v532 = vand.u32 %v531, 4294901760
        %533 = vmatpush.msra.mxu0 %v532
        %v534 = vand.u32 %v380, 4294901760
        %v535 = vsub.f32 %v380, %v534
        %v536 = vand.u32 %v535, 4294901760
        %v537 = vsub.f32 %v535, %v536
        %v538 = vand.u32 %v537, 4294901760
        %539 = vmatpush.msra.mxu0 %v538
        %v540 = vand.u32 %v379, 4294901760
        %v541 = vsub.f32 %v379, %v540
        %v542 = vand.u32 %v541, 4294901760
        %v543 = vsub.f32 %v541, %v542
        %v544 = vand.u32 %v543, 4294901760
        %545 = vmatpush.msra.mxu0 %v544
        %v546 = vand.u32 %v378, 4294901760
        %v547 = vsub.f32 %v378, %v546
        %v548 = vand.u32 %v547, 4294901760
        %v549 = vsub.f32 %v547, %v548
        %v550 = vand.u32 %v549, 4294901760
        %551 = vmatpush.msra.mxu0 %v550
        %v552 = vand.u32 %v377, 4294901760
        %v553 = vsub.f32 %v377, %v552
        %v554 = vand.u32 %v553, 4294901760
        %v555 = vsub.f32 %v553, %v554
        %v556 = vand.u32 %v555, 4294901760
        %557 = vmatpush.msra.mxu0 %v556
        %v558 = vand.u32 %v409, 4294901760
        %559 = vmatmul.f32.gmra.mxu0 %v558
        %v560 = vpop.f32.mrf.mxu0
        %v561 = vadd.f32 %v452, %v560
        %v562 = vand.u32 %v411, 4294901760
        %563 = vmatmul.f32.gmra.mxu0 %v562
        %v564 = vpop.f32.mrf.mxu0
        %v565 = vadd.f32 %v460, %v564
        %566 = vdwg.mxu0
        %v567 = vand.u32 %v392, 4294901760
        %v568 = vsub.f32 %v392, %v567
        %569 = vmatpush.msra.mxu0 %v568
        %v570 = vand.u32 %v391, 4294901760
        %v571 = vsub.f32 %v391, %v570
        %572 = vmatpush.msra.mxu0 %v571
        %v573 = vand.u32 %v390, 4294901760
        %v574 = vsub.f32 %v390, %v573
        %575 = vmatpush.msra.mxu0 %v574
        %v576 = vand.u32 %v389, 4294901760
        %v577 = vsub.f32 %v389, %v576
        %578 = vmatpush.msra.mxu0 %v577
        %v579 = vand.u32 %v388, 4294901760
        %v580 = vsub.f32 %v388, %v579
        %581 = vmatpush.msra.mxu0 %v580
        %v582 = vand.u32 %v387, 4294901760
        %v583 = vsub.f32 %v387, %v582
        %584 = vmatpush.msra.mxu0 %v583
        %v585 = vand.u32 %v386, 4294901760
        %v586 = vsub.f32 %v386, %v585
        %587 = vmatpush.msra.mxu0 %v586
        %v588 = vand.u32 %v385, 4294901760
        %v589 = vsub.f32 %v385, %v588
        %590 = vmatpush.msra.mxu0 %v589
        %v591 = vand.u32 %v384, 4294901760
        %v592 = vsub.f32 %v384, %v591
        %593 = vmatpush.msra.mxu0 %v592
        %v594 = vand.u32 %v383, 4294901760
        %v595 = vsub.f32 %v383, %v594
        %596 = vmatpush.msra.mxu0 %v595
        %v597 = vand.u32 %v382, 4294901760
        %v598 = vsub.f32 %v382, %v597
        %599 = vmatpush.msra.mxu0 %v598
        %v600 = vand.u32 %v381, 4294901760
        %v601 = vsub.f32 %v381, %v600
        %602 = vmatpush.msra.mxu0 %v601
        %v603 = vand.u32 %v380, 4294901760
        %v604 = vsub.f32 %v380, %v603
        %605 = vmatpush.msra.mxu0 %v604
        %v606 = vand.u32 %v379, 4294901760
        %v607 = vsub.f32 %v379, %v606
        %608 = vmatpush.msra.mxu0 %v607
        %v609 = vand.u32 %v378, 4294901760
        %v610 = vsub.f32 %v378, %v609
        %611 = vmatpush.msra.mxu0 %v610
        %v612 = vand.u32 %v377, 4294901760
        %v613 = vsub.f32 %v377, %v612
        %614 = vmatpush.msra.mxu0 %v613
        %v615 = vand.u32 %v409, 4294901760
        %v616 = vsub.f32 %v409, %v615
        %617 = vmatmul.f32.gmra.mxu0 %v616
        %v618 = vpop.f32.mrf.mxu0
        %v619 = vadd.f32 %v561, %v618
        %v620 = vand.u32 %v411, 4294901760
        %v621 = vsub.f32 %v411, %v620
        %622 = vmatmul.f32.gmra.mxu0 %v621
        %v623 = vpop.f32.mrf.mxu0
        %v624 = vadd.f32 %v565, %v623
        %625 = vdwg.mxu0
        %v626 = vand.u32 %v392, 4294901760
        %627 = vmatpush.msra.mxu0 %v626
        %v628 = vand.u32 %v391, 4294901760
        %629 = vmatpush.msra.mxu0 %v628
        %v630 = vand.u32 %v390, 4294901760
        %631 = vmatpush.msra.mxu0 %v630
        %v632 = vand.u32 %v389, 4294901760
        %633 = vmatpush.msra.mxu0 %v632
        %v634 = vand.u32 %v388, 4294901760
        %635 = vmatpush.msra.mxu0 %v634
        %v636 = vand.u32 %v387, 4294901760
        %637 = vmatpush.msra.mxu0 %v636
        %v638 = vand.u32 %v386, 4294901760
        %639 = vmatpush.msra.mxu0 %v638
        %v640 = vand.u32 %v385, 4294901760
        %641 = vmatpush.msra.mxu0 %v640
        %v642 = vand.u32 %v384, 4294901760
        %643 = vmatpush.msra.mxu0 %v642
        %v644 = vand.u32 %v383, 4294901760
        %645 = vmatpush.msra.mxu0 %v644
        %v646 = vand.u32 %v382, 4294901760
        %647 = vmatpush.msra.mxu0 %v646
        %v648 = vand.u32 %v381, 4294901760
        %649 = vmatpush.msra.mxu0 %v648
        %v650 = vand.u32 %v380, 4294901760
        %651 = vmatpush.msra.mxu0 %v650
        %v652 = vand.u32 %v379, 4294901760
        %653 = vmatpush.msra.mxu0 %v652
        %v654 = vand.u32 %v378, 4294901760
        %655 = vmatpush.msra.mxu0 %v654
        %v656 = vand.u32 %v377, 4294901760
        %657 = vmatpush.msra.mxu0 %v656
        %v658 = vand.u32 %v409, 4294901760
        %v659 = vsub.f32 %v409, %v658
        %v660 = vand.u32 %v659, 4294901760
        %661 = vmatmul.f32.gmra.mxu0 %v660
        %v662 = vpop.f32.mrf.mxu0
        %v663 = vadd.f32 %v619, %v662
        %v664 = vand.u32 %v411, 4294901760
        %v665 = vsub.f32 %v411, %v664
        %v666 = vand.u32 %v665, 4294901760
        %667 = vmatmul.f32.gmra.mxu0 %v666
        %v668 = vpop.f32.mrf.mxu0
        %v669 = vadd.f32 %v624, %v668
        %670 = vdwg.mxu0
        %v671 = vand.u32 %v392, 4294901760
        %v672 = vsub.f32 %v392, %v671
        %v673 = vand.u32 %v672, 4294901760
        %674 = vmatpush.msra.mxu0 %v673
        %v675 = vand.u32 %v391, 4294901760
        %v676 = vsub.f32 %v391, %v675
        %v677 = vand.u32 %v676, 4294901760
        %678 = vmatpush.msra.mxu0 %v677
        %v679 = vand.u32 %v390, 4294901760
        %v680 = vsub.f32 %v390, %v679
        %v681 = vand.u32 %v680, 4294901760
        %682 = vmatpush.msra.mxu0 %v681
        %v683 = vand.u32 %v389, 4294901760
        %v684 = vsub.f32 %v389, %v683
        %v685 = vand.u32 %v684, 4294901760
        %686 = vmatpush.msra.mxu0 %v685
        %v687 = vand.u32 %v388, 4294901760
        %v688 = vsub.f32 %v388, %v687
        %v689 = vand.u32 %v688, 4294901760
        %690 = vmatpush.msra.mxu0 %v689
        %v691 = vand.u32 %v387, 4294901760
        %v692 = vsub.f32 %v387, %v691
        %v693 = vand.u32 %v692, 4294901760
        %694 = vmatpush.msra.mxu0 %v693
        %v695 = vand.u32 %v386, 4294901760
        %v696 = vsub.f32 %v386, %v695
        %v697 = vand.u32 %v696, 4294901760
        %698 = vmatpush.msra.mxu0 %v697
        %v699 = vand.u32 %v385, 4294901760
        %v700 = vsub.f32 %v385, %v699
        %v701 = vand.u32 %v700, 4294901760
        %702 = vmatpush.msra.mxu0 %v701
        %v703 = vand.u32 %v384, 4294901760
        %v704 = vsub.f32 %v384, %v703
        %v705 = vand.u32 %v704, 4294901760
        %706 = vmatpush.msra.mxu0 %v705
        %v707 = vand.u32 %v383, 4294901760
        %v708 = vsub.f32 %v383, %v707
        %v709 = vand.u32 %v708, 4294901760
        %710 = vmatpush.msra.mxu0 %v709
        %v711 = vand.u32 %v382, 4294901760
        %v712 = vsub.f32 %v382, %v711
        %v713 = vand.u32 %v712, 4294901760
        %714 = vmatpush.msra.mxu0 %v713
        %v715 = vand.u32 %v381, 4294901760
        %v716 = vsub.f32 %v381, %v715
        %v717 = vand.u32 %v716, 4294901760
        %718 = vmatpush.msra.mxu0 %v717
        %v719 = vand.u32 %v380, 4294901760
        %v720 = vsub.f32 %v380, %v719
        %v721 = vand.u32 %v720, 4294901760
        %722 = vmatpush.msra.mxu0 %v721
        %v723 = vand.u32 %v379, 4294901760
        %v724 = vsub.f32 %v379, %v723
        %v725 = vand.u32 %v724, 4294901760
        %726 = vmatpush.msra.mxu0 %v725
        %v727 = vand.u32 %v378, 4294901760
        %v728 = vsub.f32 %v378, %v727
        %v729 = vand.u32 %v728, 4294901760
        %730 = vmatpush.msra.mxu0 %v729
        %v731 = vand.u32 %v377, 4294901760
        %v732 = vsub.f32 %v377, %v731
        %v733 = vand.u32 %v732, 4294901760
        %734 = vmatpush.msra.mxu0 %v733
        %v735 = vand.u32 %v409, 4294901760
        %736 = vmatmul.f32.gmra.mxu0 %v735
        %v737 = vpop.f32.mrf.mxu0
        %v738 = vadd.f32 %v663, %v737
        %v739 = vand.u32 %v411, 4294901760
        %740 = vmatmul.f32.gmra.mxu0 %v739
        %v741 = vpop.f32.mrf.mxu0
        %v742 = vadd.f32 %v669, %v741
        %743 = vdwg.mxu0
        %v744 = vand.u32 %v392, 4294901760
        %745 = vmatpush.msra.mxu0 %v744
        %v746 = vand.u32 %v391, 4294901760
        %747 = vmatpush.msra.mxu0 %v746
        %v748 = vand.u32 %v390, 4294901760
        %749 = vmatpush.msra.mxu0 %v748
        %v750 = vand.u32 %v389, 4294901760
        %751 = vmatpush.msra.mxu0 %v750
        %v752 = vand.u32 %v388, 4294901760
        %753 = vmatpush.msra.mxu0 %v752
        %v754 = vand.u32 %v387, 4294901760
        %755 = vmatpush.msra.mxu0 %v754
        %v756 = vand.u32 %v386, 4294901760
        %757 = vmatpush.msra.mxu0 %v756
        %v758 = vand.u32 %v385, 4294901760
        %759 = vmatpush.msra.mxu0 %v758
        %v760 = vand.u32 %v384, 4294901760
        %761 = vmatpush.msra.mxu0 %v760
        %v762 = vand.u32 %v383, 4294901760
        %763 = vmatpush.msra.mxu0 %v762
        %v764 = vand.u32 %v382, 4294901760
        %765 = vmatpush.msra.mxu0 %v764
        %v766 = vand.u32 %v381, 4294901760
        %767 = vmatpush.msra.mxu0 %v766
        %v768 = vand.u32 %v380, 4294901760
        %769 = vmatpush.msra.mxu0 %v768
        %v770 = vand.u32 %v379, 4294901760
        %771 = vmatpush.msra.mxu0 %v770
        %v772 = vand.u32 %v378, 4294901760
        %773 = vmatpush.msra.mxu0 %v772
        %v774 = vand.u32 %v377, 4294901760
        %775 = vmatpush.msra.mxu0 %v774
        %v776 = vand.u32 %v409, 4294901760
        %777 = vmatmul.f32.gmra.mxu0 %v776
        %v778 = vpop.f32.mrf.mxu0
        %v779 = vadd.f32 %v738, %v778
        %v780 = vand.u32 %v411, 4294901760
        %781 = vmatmul.f32.gmra.mxu0 %v780
        %v782 = vpop.f32.mrf.mxu0
        %v783 = vadd.f32 %v742, %v782
        %784 = vdwg.mxu0
        %v785 = vand.u32 %v408, 4294901760
        %786 = vmatpush.msra.mxu0 %v785
        %v787 = vand.u32 %v407, 4294901760
        %788 = vmatpush.msra.mxu0 %v787
        %v789 = vand.u32 %v406, 4294901760
        %790 = vmatpush.msra.mxu0 %v789
        %v791 = vand.u32 %v405, 4294901760
        %792 = vmatpush.msra.mxu0 %v791
        %v793 = vand.u32 %v404, 4294901760
        %794 = vmatpush.msra.mxu0 %v793
        %v795 = vand.u32 %v403, 4294901760
        %796 = vmatpush.msra.mxu0 %v795
        %v797 = vand.u32 %v402, 4294901760
        %798 = vmatpush.msra.mxu0 %v797
        %v799 = vand.u32 %v401, 4294901760
        %800 = vmatpush.msra.mxu0 %v799
        %v801 = vand.u32 %v400, 4294901760
        %802 = vmatpush.msra.mxu0 %v801
        %v803 = vand.u32 %v399, 4294901760
        %804 = vmatpush.msra.mxu0 %v803
        %v805 = vand.u32 %v398, 4294901760
        %806 = vmatpush.msra.mxu0 %v805
        %v807 = vand.u32 %v397, 4294901760
        %808 = vmatpush.msra.mxu0 %v807
        %v809 = vand.u32 %v396, 4294901760
        %810 = vmatpush.msra.mxu0 %v809
        %v811 = vand.u32 %v395, 4294901760
        %812 = vmatpush.msra.mxu0 %v811
        %v813 = vand.u32 %v394, 4294901760
        %814 = vmatpush.msra.mxu0 %v813
        %v815 = vand.u32 %v393, 4294901760
        %816 = vmatpush.msra.mxu0 %v815
        %v817 = vand.u32 %v410, 4294901760
        %v818 = vsub.f32 %v410, %v817
        %v819 = vand.u32 %v818, 4294901760
        %v820 = vsub.f32 %v818, %v819
        %v821 = vand.u32 %v820, 4294901760
        %822 = vmatmul.f32.gmra.mxu0 %v821
        %v823 = vpop.f32.mrf.mxu0
        %v824 = vadd.f32 %v779, %v823
        %v825 = vand.u32 %v412, 4294901760
        %v826 = vsub.f32 %v412, %v825
        %v827 = vand.u32 %v826, 4294901760
        %v828 = vsub.f32 %v826, %v827
        %v829 = vand.u32 %v828, 4294901760
        %830 = vmatmul.f32.gmra.mxu0 %v829
        %v831 = vpop.f32.mrf.mxu0
        %v832 = vadd.f32 %v783, %v831
        %833 = vdwg.mxu0
        %v834 = vand.u32 %v408, 4294901760
        %v835 = vsub.f32 %v408, %v834
        %v836 = vand.u32 %v835, 4294901760
        %v837 = vsub.f32 %v835, %v836
        %v838 = vand.u32 %v837, 4294901760
        %839 = vmatpush.msra.mxu0 %v838
        %v840 = vand.u32 %v407, 4294901760
        %v841 = vsub.f32 %v407, %v840
        %v842 = vand.u32 %v841, 4294901760
        %v843 = vsub.f32 %v841, %v842
        %v844 = vand.u32 %v843, 4294901760
        %845 = vmatpush.msra.mxu0 %v844
        %v846 = vand.u32 %v406, 4294901760
        %v847 = vsub.f32 %v406, %v846
        %v848 = vand.u32 %v847, 4294901760
        %v849 = vsub.f32 %v847, %v848
        %v850 = vand.u32 %v849, 4294901760
        %851 = vmatpush.msra.mxu0 %v850
        %v852 = vand.u32 %v405, 4294901760
        %v853 = vsub.f32 %v405, %v852
        %v854 = vand.u32 %v853, 4294901760
        %v855 = vsub.f32 %v853, %v854
        %v856 = vand.u32 %v855, 4294901760
        %857 = vmatpush.msra.mxu0 %v856
        %v858 = vand.u32 %v404, 4294901760
        %v859 = vsub.f32 %v404, %v858
        %v860 = vand.u32 %v859, 4294901760
        %v861 = vsub.f32 %v859, %v860
        %v862 = vand.u32 %v861, 4294901760
        %863 = vmatpush.msra.mxu0 %v862
        %v864 = vand.u32 %v403, 4294901760
        %v865 = vsub.f32 %v403, %v864
        %v866 = vand.u32 %v865, 4294901760
        %v867 = vsub.f32 %v865, %v866
        %v868 = vand.u32 %v867, 4294901760
        %869 = vmatpush.msra.mxu0 %v868
        %v870 = vand.u32 %v402, 4294901760
        %v871 = vsub.f32 %v402, %v870
        %v872 = vand.u32 %v871, 4294901760
        %v873 = vsub.f32 %v871, %v872
        %v874 = vand.u32 %v873, 4294901760
        %875 = vmatpush.msra.mxu0 %v874
        %v876 = vand.u32 %v401, 4294901760
        %v877 = vsub.f32 %v401, %v876
        %v878 = vand.u32 %v877, 4294901760
        %v879 = vsub.f32 %v877, %v878
        %v880 = vand.u32 %v879, 4294901760
        %881 = vmatpush.msra.mxu0 %v880
        %v882 = vand.u32 %v400, 4294901760
        %v883 = vsub.f32 %v400, %v882
        %v884 = vand.u32 %v883, 4294901760
        %v885 = vsub.f32 %v883, %v884
        %v886 = vand.u32 %v885, 4294901760
        %887 = vmatpush.msra.mxu0 %v886
        %v888 = vand.u32 %v399, 4294901760
        %v889 = vsub.f32 %v399, %v888
        %v890 = vand.u32 %v889, 4294901760
        %v891 = vsub.f32 %v889, %v890
        %v892 = vand.u32 %v891, 4294901760
        %893 = vmatpush.msra.mxu0 %v892
        %v894 = vand.u32 %v398, 4294901760
        %v895 = vsub.f32 %v398, %v894
        %v896 = vand.u32 %v895, 4294901760
        %v897 = vsub.f32 %v895, %v896
        %v898 = vand.u32 %v897, 4294901760
        %899 = vmatpush.msra.mxu0 %v898
        %v900 = vand.u32 %v397, 4294901760
        %v901 = vsub.f32 %v397, %v900
        %v902 = vand.u32 %v901, 4294901760
        %v903 = vsub.f32 %v901, %v902
        %v904 = vand.u32 %v903, 4294901760
        %905 = vmatpush.msra.mxu0 %v904
        %v906 = vand.u32 %v396, 4294901760
        %v907 = vsub.f32 %v396, %v906
        %v908 = vand.u32 %v907, 4294901760
        %v909 = vsub.f32 %v907, %v908
        %v910 = vand.u32 %v909, 4294901760
        %911 = vmatpush.msra.mxu0 %v910
        %v912 = vand.u32 %v395, 4294901760
        %v913 = vsub.f32 %v395, %v912
        %v914 = vand.u32 %v913, 4294901760
        %v915 = vsub.f32 %v913, %v914
        %v916 = vand.u32 %v915, 4294901760
        %917 = vmatpush.msra.mxu0 %v916
        %v918 = vand.u32 %v394, 4294901760
        %v919 = vsub.f32 %v394, %v918
        %v920 = vand.u32 %v919, 4294901760
        %v921 = vsub.f32 %v919, %v920
        %v922 = vand.u32 %v921, 4294901760
        %923 = vmatpush.msra.mxu0 %v922
        %v924 = vand.u32 %v393, 4294901760
        %v925 = vsub.f32 %v393, %v924
        %v926 = vand.u32 %v925, 4294901760
        %v927 = vsub.f32 %v925, %v926
        %v928 = vand.u32 %v927, 4294901760
        %929 = vmatpush.msra.mxu0 %v928
        %v930 = vand.u32 %v410, 4294901760
        %931 = vmatmul.f32.gmra.mxu0 %v930
        %v932 = vpop.f32.mrf.mxu0
        %v933 = vadd.f32 %v824, %v932
        %v934 = vand.u32 %v412, 4294901760
        %935 = vmatmul.f32.gmra.mxu0 %v934
        %v936 = vpop.f32.mrf.mxu0
        %v937 = vadd.f32 %v832, %v936
        %938 = vdwg.mxu0
        %v939 = vand.u32 %v408, 4294901760
        %v940 = vsub.f32 %v408, %v939
        %941 = vmatpush.msra.mxu0 %v940
        %v942 = vand.u32 %v407, 4294901760
        %v943 = vsub.f32 %v407, %v942
        %944 = vmatpush.msra.mxu0 %v943
        %v945 = vand.u32 %v406, 4294901760
        %v946 = vsub.f32 %v406, %v945
        %947 = vmatpush.msra.mxu0 %v946
        %v948 = vand.u32 %v405, 4294901760
        %v949 = vsub.f32 %v405, %v948
        %950 = vmatpush.msra.mxu0 %v949
        %v951 = vand.u32 %v404, 4294901760
        %v952 = vsub.f32 %v404, %v951
        %953 = vmatpush.msra.mxu0 %v952
        %v954 = vand.u32 %v403, 4294901760
        %v955 = vsub.f32 %v403, %v954
        %956 = vmatpush.msra.mxu0 %v955
        %v957 = vand.u32 %v402, 4294901760
        %v958 = vsub.f32 %v402, %v957
        %959 = vmatpush.msra.mxu0 %v958
        %v960 = vand.u32 %v401, 4294901760
        %v961 = vsub.f32 %v401, %v960
        %962 = vmatpush.msra.mxu0 %v961
        %v963 = vand.u32 %v400, 4294901760
        %v964 = vsub.f32 %v400, %v963
        %965 = vmatpush.msra.mxu0 %v964
        %v966 = vand.u32 %v399, 4294901760
        %v967 = vsub.f32 %v399, %v966
        %968 = vmatpush.msra.mxu0 %v967
        %v969 = vand.u32 %v398, 4294901760
        %v970 = vsub.f32 %v398, %v969
        %971 = vmatpush.msra.mxu0 %v970
        %v972 = vand.u32 %v397, 4294901760
        %v973 = vsub.f32 %v397, %v972
        %974 = vmatpush.msra.mxu0 %v973
        %v975 = vand.u32 %v396, 4294901760
        %v976 = vsub.f32 %v396, %v975
        %977 = vmatpush.msra.mxu0 %v976
        %v978 = vand.u32 %v395, 4294901760
        %v979 = vsub.f32 %v395, %v978
        %980 = vmatpush.msra.mxu0 %v979
        %v981 = vand.u32 %v394, 4294901760
        %v982 = vsub.f32 %v394, %v981
        %983 = vmatpush.msra.mxu0 %v982
        %v984 = vand.u32 %v393, 4294901760
        %v985 = vsub.f32 %v393, %v984
        %986 = vmatpush.msra.mxu0 %v985
        %v987 = vand.u32 %v410, 4294901760
        %v988 = vsub.f32 %v410, %v987
        %989 = vmatmul.f32.gmra.mxu0 %v988
        %v990 = vpop.f32.mrf.mxu0
        %v991 = vadd.f32 %v933, %v990
        %v992 = vand.u32 %v412, 4294901760
        %v993 = vsub.f32 %v412, %v992
        %994 = vmatmul.f32.gmra.mxu0 %v993
        %v995 = vpop.f32.mrf.mxu0
        %v996 = vadd.f32 %v937, %v995
        %997 = vdwg.mxu0
        %v998 = vand.u32 %v408, 4294901760
        %999 = vmatpush.msra.mxu0 %v998
        %v1000 = vand.u32 %v407, 4294901760
        %1001 = vmatpush.msra.mxu0 %v1000
        %v1002 = vand.u32 %v406, 4294901760
        %1003 = vmatpush.msra.mxu0 %v1002
        %v1004 = vand.u32 %v405, 4294901760
        %1005 = vmatpush.msra.mxu0 %v1004
        %v1006 = vand.u32 %v404, 4294901760
        %1007 = vmatpush.msra.mxu0 %v1006
        %v1008 = vand.u32 %v403, 4294901760
        %1009 = vmatpush.msra.mxu0 %v1008
        %v1010 = vand.u32 %v402, 4294901760
        %1011 = vmatpush.msra.mxu0 %v1010
        %v1012 = vand.u32 %v401, 4294901760
        %1013 = vmatpush.msra.mxu0 %v1012
        %v1014 = vand.u32 %v400, 4294901760
        %1015 = vmatpush.msra.mxu0 %v1014
        %v1016 = vand.u32 %v399, 4294901760
        %1017 = vmatpush.msra.mxu0 %v1016
        %v1018 = vand.u32 %v398, 4294901760
        %1019 = vmatpush.msra.mxu0 %v1018
        %v1020 = vand.u32 %v397, 4294901760
        %1021 = vmatpush.msra.mxu0 %v1020
        %v1022 = vand.u32 %v396, 4294901760
        %1023 = vmatpush.msra.mxu0 %v1022
        %v1024 = vand.u32 %v395, 4294901760
        %1025 = vmatpush.msra.mxu0 %v1024
        %v1026 = vand.u32 %v394, 4294901760
        %1027 = vmatpush.msra.mxu0 %v1026
        %v1028 = vand.u32 %v393, 4294901760
        %1029 = vmatpush.msra.mxu0 %v1028
        %v1030 = vand.u32 %v410, 4294901760
        %v1031 = vsub.f32 %v410, %v1030
        %v1032 = vand.u32 %v1031, 4294901760
        %1033 = vmatmul.f32.gmra.mxu0 %v1032
        %v1034 = vpop.f32.mrf.mxu0
        %v1035 = vadd.f32 %v991, %v1034
        %v1036 = vand.u32 %v412, 4294901760
        %v1037 = vsub.f32 %v412, %v1036
        %v1038 = vand.u32 %v1037, 4294901760
        %1039 = vmatmul.f32.gmra.mxu0 %v1038
        %v1040 = vpop.f32.mrf.mxu0
        %v1041 = vadd.f32 %v996, %v1040
        %1042 = vdwg.mxu0
        %v1043 = vand.u32 %v408, 4294901760
        %v1044 = vsub.f32 %v408, %v1043
        %v1045 = vand.u32 %v1044, 4294901760
        %1046 = vmatpush.msra.mxu0 %v1045
        %v1047 = vand.u32 %v407, 4294901760
        %v1048 = vsub.f32 %v407, %v1047
        %v1049 = vand.u32 %v1048, 4294901760
        %1050 = vmatpush.msra.mxu0 %v1049
        %v1051 = vand.u32 %v406, 4294901760
        %v1052 = vsub.f32 %v406, %v1051
        %v1053 = vand.u32 %v1052, 4294901760
        %1054 = vmatpush.msra.mxu0 %v1053
        %v1055 = vand.u32 %v405, 4294901760
        %v1056 = vsub.f32 %v405, %v1055
        %v1057 = vand.u32 %v1056, 4294901760
        %1058 = vmatpush.msra.mxu0 %v1057
        %v1059 = vand.u32 %v404, 4294901760
        %v1060 = vsub.f32 %v404, %v1059
        %v1061 = vand.u32 %v1060, 4294901760
        %1062 = vmatpush.msra.mxu0 %v1061
        %v1063 = vand.u32 %v403, 4294901760
        %v1064 = vsub.f32 %v403, %v1063
        %v1065 = vand.u32 %v1064, 4294901760
        %1066 = vmatpush.msra.mxu0 %v1065
        %v1067 = vand.u32 %v402, 4294901760
        %v1068 = vsub.f32 %v402, %v1067
        %v1069 = vand.u32 %v1068, 4294901760
        %1070 = vmatpush.msra.mxu0 %v1069
        %v1071 = vand.u32 %v401, 4294901760
        %v1072 = vsub.f32 %v401, %v1071
        %v1073 = vand.u32 %v1072, 4294901760
        %1074 = vmatpush.msra.mxu0 %v1073
        %v1075 = vand.u32 %v400, 4294901760
        %v1076 = vsub.f32 %v400, %v1075
        %v1077 = vand.u32 %v1076, 4294901760
        %1078 = vmatpush.msra.mxu0 %v1077
        %v1079 = vand.u32 %v399, 4294901760
        %v1080 = vsub.f32 %v399, %v1079
        %v1081 = vand.u32 %v1080, 4294901760
        %1082 = vmatpush.msra.mxu0 %v1081
        %v1083 = vand.u32 %v398, 4294901760
        %v1084 = vsub.f32 %v398, %v1083
        %v1085 = vand.u32 %v1084, 4294901760
        %1086 = vmatpush.msra.mxu0 %v1085
        %v1087 = vand.u32 %v397, 4294901760
        %v1088 = vsub.f32 %v397, %v1087
        %v1089 = vand.u32 %v1088, 4294901760
        %1090 = vmatpush.msra.mxu0 %v1089
        %v1091 = vand.u32 %v396, 4294901760
        %v1092 = vsub.f32 %v396, %v1091
        %v1093 = vand.u32 %v1092, 4294901760
        %1094 = vmatpush.msra.mxu0 %v1093
        %v1095 = vand.u32 %v395, 4294901760
        %v1096 = vsub.f32 %v395, %v1095
        %v1097 = vand.u32 %v1096, 4294901760
        %1098 = vmatpush.msra.mxu0 %v1097
        %v1099 = vand.u32 %v394, 4294901760
        %v1100 = vsub.f32 %v394, %v1099
        %v1101 = vand.u32 %v1100, 4294901760
        %1102 = vmatpush.msra.mxu0 %v1101
        %v1103 = vand.u32 %v393, 4294901760
        %v1104 = vsub.f32 %v393, %v1103
        %v1105 = vand.u32 %v1104, 4294901760
        %1106 = vmatpush.msra.mxu0 %v1105
        %v1107 = vand.u32 %v410, 4294901760
        %1108 = vmatmul.f32.gmra.mxu0 %v1107
        %v1109 = vpop.f32.mrf.mxu0
        %v1110 = vadd.f32 %v1035, %v1109
        %v1111 = vand.u32 %v412, 4294901760
        %1112 = vmatmul.f32.gmra.mxu0 %v1111
        %v1113 = vpop.f32.mrf.mxu0
        %v1114 = vadd.f32 %v1041, %v1113
        %1115 = vdwg.mxu0
        %v1116 = vand.u32 %v408, 4294901760
        %1117 = vmatpush.msra.mxu0 %v1116
        %v1118 = vand.u32 %v407, 4294901760
        %1119 = vmatpush.msra.mxu0 %v1118
        %v1120 = vand.u32 %v406, 4294901760
        %1121 = vmatpush.msra.mxu0 %v1120
        %v1122 = vand.u32 %v405, 4294901760
        %1123 = vmatpush.msra.mxu0 %v1122
        %v1124 = vand.u32 %v404, 4294901760
        %1125 = vmatpush.msra.mxu0 %v1124
        %v1126 = vand.u32 %v403, 4294901760
        %1127 = vmatpush.msra.mxu0 %v1126
        %v1128 = vand.u32 %v402, 4294901760
        %1129 = vmatpush.msra.mxu0 %v1128
        %v1130 = vand.u32 %v401, 4294901760
        %1131 = vmatpush.msra.mxu0 %v1130
        %v1132 = vand.u32 %v400, 4294901760
        %1133 = vmatpush.msra.mxu0 %v1132
        %v1134 = vand.u32 %v399, 4294901760
        %1135 = vmatpush.msra.mxu0 %v1134
        %v1136 = vand.u32 %v398, 4294901760
        %1137 = vmatpush.msra.mxu0 %v1136
        %v1138 = vand.u32 %v397, 4294901760
        %1139 = vmatpush.msra.mxu0 %v1138
        %v1140 = vand.u32 %v396, 4294901760
        %1141 = vmatpush.msra.mxu0 %v1140
        %v1142 = vand.u32 %v395, 4294901760
        %1143 = vmatpush.msra.mxu0 %v1142
        %v1144 = vand.u32 %v394, 4294901760
        %1145 = vmatpush.msra.mxu0 %v1144
        %v1146 = vand.u32 %v393, 4294901760
        %1147 = vmatpush.msra.mxu0 %v1146
        %v1148 = vand.u32 %v410, 4294901760
        %1149 = vmatmul.f32.gmra.mxu0 %v1148
        %v1150 = vpop.f32.mrf.mxu0
        %v1151 = vadd.f32 %v1110, %v1150
        %v1152 = vand.u32 %v412, 4294901760
        %1153 = vmatmul.f32.gmra.mxu0 %v1152
        %v1154 = vpop.f32.mrf.mxu0
        %v1155 = vadd.f32 %v1114, %v1154
        %1156 = vdwg.mxu0
        %v1157 = vmul.f32 %v373, %v373
        %v1158 = vmul.f32 %v374, %v374
        %v1159 = vmul.f32 %v375, %v375
        %v1160 = vmul.f32 %v376, %v376
        %v1161 = vand.u32 %v392, 4294901760
        %1162 = vmatpush.msra.mxu0 %v1161
        %v1163 = vand.u32 %v391, 4294901760
        %1164 = vmatpush.msra.mxu0 %v1163
        %v1165 = vand.u32 %v390, 4294901760
        %1166 = vmatpush.msra.mxu0 %v1165
        %v1167 = vand.u32 %v389, 4294901760
        %1168 = vmatpush.msra.mxu0 %v1167
        %v1169 = vand.u32 %v388, 4294901760
        %1170 = vmatpush.msra.mxu0 %v1169
        %v1171 = vand.u32 %v387, 4294901760
        %1172 = vmatpush.msra.mxu0 %v1171
        %v1173 = vand.u32 %v386, 4294901760
        %1174 = vmatpush.msra.mxu0 %v1173
        %v1175 = vand.u32 %v385, 4294901760
        %1176 = vmatpush.msra.mxu0 %v1175
        %v1177 = vand.u32 %v384, 4294901760
        %1178 = vmatpush.msra.mxu0 %v1177
        %v1179 = vand.u32 %v383, 4294901760
        %1180 = vmatpush.msra.mxu0 %v1179
        %v1181 = vand.u32 %v382, 4294901760
        %1182 = vmatpush.msra.mxu0 %v1181
        %v1183 = vand.u32 %v381, 4294901760
        %1184 = vmatpush.msra.mxu0 %v1183
        %v1185 = vand.u32 %v380, 4294901760
        %1186 = vmatpush.msra.mxu0 %v1185
        %v1187 = vand.u32 %v379, 4294901760
        %1188 = vmatpush.msra.mxu0 %v1187
        %v1189 = vand.u32 %v378, 4294901760
        %1190 = vmatpush.msra.mxu0 %v1189
        %v1191 = vand.u32 %v377, 4294901760
        %1192 = vmatpush.msra.mxu0 %v1191
        %v1193 = vand.u32 %v1157, 4294901760
        %v1194 = vsub.f32 %v1157, %v1193
        %v1195 = vand.u32 %v1194, 4294901760
        %v1196 = vsub.f32 %v1194, %v1195
        %v1197 = vand.u32 %v1196, 4294901760
        %1198 = vmatmul.f32.gmra.mxu0 %v1197
        %v1199 = vpop.f32.mrf.mxu0
        %v1200 = vadd.f32 0.0, %v1199
        %v1201 = vand.u32 %v1159, 4294901760
        %v1202 = vsub.f32 %v1159, %v1201
        %v1203 = vand.u32 %v1202, 4294901760
        %v1204 = vsub.f32 %v1202, %v1203
        %v1205 = vand.u32 %v1204, 4294901760
        %1206 = vmatmul.f32.gmra.mxu0 %v1205
        %v1207 = vpop.f32.mrf.mxu0
        %v1208 = vadd.f32 0.0, %v1207
        %1209 = vdwg.mxu0
        %v1210 = vand.u32 %v392, 4294901760
        %v1211 = vsub.f32 %v392, %v1210
        %v1212 = vand.u32 %v1211, 4294901760
        %v1213 = vsub.f32 %v1211, %v1212
        %v1214 = vand.u32 %v1213, 4294901760
        %1215 = vmatpush.msra.mxu0 %v1214
        %v1216 = vand.u32 %v391, 4294901760
        %v1217 = vsub.f32 %v391, %v1216
        %v1218 = vand.u32 %v1217, 4294901760
        %v1219 = vsub.f32 %v1217, %v1218
        %v1220 = vand.u32 %v1219, 4294901760
        %1221 = vmatpush.msra.mxu0 %v1220
        %v1222 = vand.u32 %v390, 4294901760
        %v1223 = vsub.f32 %v390, %v1222
        %v1224 = vand.u32 %v1223, 4294901760
        %v1225 = vsub.f32 %v1223, %v1224
        %v1226 = vand.u32 %v1225, 4294901760
        %1227 = vmatpush.msra.mxu0 %v1226
        %v1228 = vand.u32 %v389, 4294901760
        %v1229 = vsub.f32 %v389, %v1228
        %v1230 = vand.u32 %v1229, 4294901760
        %v1231 = vsub.f32 %v1229, %v1230
        %v1232 = vand.u32 %v1231, 4294901760
        %1233 = vmatpush.msra.mxu0 %v1232
        %v1234 = vand.u32 %v388, 4294901760
        %v1235 = vsub.f32 %v388, %v1234
        %v1236 = vand.u32 %v1235, 4294901760
        %v1237 = vsub.f32 %v1235, %v1236
        %v1238 = vand.u32 %v1237, 4294901760
        %1239 = vmatpush.msra.mxu0 %v1238
        %v1240 = vand.u32 %v387, 4294901760
        %v1241 = vsub.f32 %v387, %v1240
        %v1242 = vand.u32 %v1241, 4294901760
        %v1243 = vsub.f32 %v1241, %v1242
        %v1244 = vand.u32 %v1243, 4294901760
        %1245 = vmatpush.msra.mxu0 %v1244
        %v1246 = vand.u32 %v386, 4294901760
        %v1247 = vsub.f32 %v386, %v1246
        %v1248 = vand.u32 %v1247, 4294901760
        %v1249 = vsub.f32 %v1247, %v1248
        %v1250 = vand.u32 %v1249, 4294901760
        %1251 = vmatpush.msra.mxu0 %v1250
        %v1252 = vand.u32 %v385, 4294901760
        %v1253 = vsub.f32 %v385, %v1252
        %v1254 = vand.u32 %v1253, 4294901760
        %v1255 = vsub.f32 %v1253, %v1254
        %v1256 = vand.u32 %v1255, 4294901760
        %1257 = vmatpush.msra.mxu0 %v1256
        %v1258 = vand.u32 %v384, 4294901760
        %v1259 = vsub.f32 %v384, %v1258
        %v1260 = vand.u32 %v1259, 4294901760
        %v1261 = vsub.f32 %v1259, %v1260
        %v1262 = vand.u32 %v1261, 4294901760
        %1263 = vmatpush.msra.mxu0 %v1262
        %v1264 = vand.u32 %v383, 4294901760
        %v1265 = vsub.f32 %v383, %v1264
        %v1266 = vand.u32 %v1265, 4294901760
        %v1267 = vsub.f32 %v1265, %v1266
        %v1268 = vand.u32 %v1267, 4294901760
        %1269 = vmatpush.msra.mxu0 %v1268
        %v1270 = vand.u32 %v382, 4294901760
        %v1271 = vsub.f32 %v382, %v1270
        %v1272 = vand.u32 %v1271, 4294901760
        %v1273 = vsub.f32 %v1271, %v1272
        %v1274 = vand.u32 %v1273, 4294901760
        %1275 = vmatpush.msra.mxu0 %v1274
        %v1276 = vand.u32 %v381, 4294901760
        %v1277 = vsub.f32 %v381, %v1276
        %v1278 = vand.u32 %v1277, 4294901760
        %v1279 = vsub.f32 %v1277, %v1278
        %v1280 = vand.u32 %v1279, 4294901760
        %1281 = vmatpush.msra.mxu0 %v1280
        %v1282 = vand.u32 %v380, 4294901760
        %v1283 = vsub.f32 %v380, %v1282
        %v1284 = vand.u32 %v1283, 4294901760
        %v1285 = vsub.f32 %v1283, %v1284
        %v1286 = vand.u32 %v1285, 4294901760
        %1287 = vmatpush.msra.mxu0 %v1286
        %v1288 = vand.u32 %v379, 4294901760
        %v1289 = vsub.f32 %v379, %v1288
        %v1290 = vand.u32 %v1289, 4294901760
        %v1291 = vsub.f32 %v1289, %v1290
        %v1292 = vand.u32 %v1291, 4294901760
        %1293 = vmatpush.msra.mxu0 %v1292
        %v1294 = vand.u32 %v378, 4294901760
        %v1295 = vsub.f32 %v378, %v1294
        %v1296 = vand.u32 %v1295, 4294901760
        %v1297 = vsub.f32 %v1295, %v1296
        %v1298 = vand.u32 %v1297, 4294901760
        %1299 = vmatpush.msra.mxu0 %v1298
        %v1300 = vand.u32 %v377, 4294901760
        %v1301 = vsub.f32 %v377, %v1300
        %v1302 = vand.u32 %v1301, 4294901760
        %v1303 = vsub.f32 %v1301, %v1302
        %v1304 = vand.u32 %v1303, 4294901760
        %1305 = vmatpush.msra.mxu0 %v1304
        %v1306 = vand.u32 %v1157, 4294901760
        %1307 = vmatmul.f32.gmra.mxu0 %v1306
        %v1308 = vpop.f32.mrf.mxu0
        %v1309 = vadd.f32 %v1200, %v1308
        %v1310 = vand.u32 %v1159, 4294901760
        %1311 = vmatmul.f32.gmra.mxu0 %v1310
        %v1312 = vpop.f32.mrf.mxu0
        %v1313 = vadd.f32 %v1208, %v1312
        %1314 = vdwg.mxu0
        %v1315 = vand.u32 %v392, 4294901760
        %v1316 = vsub.f32 %v392, %v1315
        %1317 = vmatpush.msra.mxu0 %v1316
        %v1318 = vand.u32 %v391, 4294901760
        %v1319 = vsub.f32 %v391, %v1318
        %1320 = vmatpush.msra.mxu0 %v1319
        %v1321 = vand.u32 %v390, 4294901760
        %v1322 = vsub.f32 %v390, %v1321
        %1323 = vmatpush.msra.mxu0 %v1322
        %v1324 = vand.u32 %v389, 4294901760
        %v1325 = vsub.f32 %v389, %v1324
        %1326 = vmatpush.msra.mxu0 %v1325
        %v1327 = vand.u32 %v388, 4294901760
        %v1328 = vsub.f32 %v388, %v1327
        %1329 = vmatpush.msra.mxu0 %v1328
        %v1330 = vand.u32 %v387, 4294901760
        %v1331 = vsub.f32 %v387, %v1330
        %1332 = vmatpush.msra.mxu0 %v1331
        %v1333 = vand.u32 %v386, 4294901760
        %v1334 = vsub.f32 %v386, %v1333
        %1335 = vmatpush.msra.mxu0 %v1334
        %v1336 = vand.u32 %v385, 4294901760
        %v1337 = vsub.f32 %v385, %v1336
        %1338 = vmatpush.msra.mxu0 %v1337
        %v1339 = vand.u32 %v384, 4294901760
        %v1340 = vsub.f32 %v384, %v1339
        %1341 = vmatpush.msra.mxu0 %v1340
        %v1342 = vand.u32 %v383, 4294901760
        %v1343 = vsub.f32 %v383, %v1342
        %1344 = vmatpush.msra.mxu0 %v1343
        %v1345 = vand.u32 %v382, 4294901760
        %v1346 = vsub.f32 %v382, %v1345
        %1347 = vmatpush.msra.mxu0 %v1346
        %v1348 = vand.u32 %v381, 4294901760
        %v1349 = vsub.f32 %v381, %v1348
        %1350 = vmatpush.msra.mxu0 %v1349
        %v1351 = vand.u32 %v380, 4294901760
        %v1352 = vsub.f32 %v380, %v1351
        %1353 = vmatpush.msra.mxu0 %v1352
        %v1354 = vand.u32 %v379, 4294901760
        %v1355 = vsub.f32 %v379, %v1354
        %1356 = vmatpush.msra.mxu0 %v1355
        %v1357 = vand.u32 %v378, 4294901760
        %v1358 = vsub.f32 %v378, %v1357
        %1359 = vmatpush.msra.mxu0 %v1358
        %v1360 = vand.u32 %v377, 4294901760
        %v1361 = vsub.f32 %v377, %v1360
        %1362 = vmatpush.msra.mxu0 %v1361
        %v1363 = vand.u32 %v1157, 4294901760
        %v1364 = vsub.f32 %v1157, %v1363
        %1365 = vmatmul.f32.gmra.mxu0 %v1364
        %v1366 = vpop.f32.mrf.mxu0
        %v1367 = vadd.f32 %v1309, %v1366
        %v1368 = vand.u32 %v1159, 4294901760
        %v1369 = vsub.f32 %v1159, %v1368
        %1370 = vmatmul.f32.gmra.mxu0 %v1369
        %v1371 = vpop.f32.mrf.mxu0
        %v1372 = vadd.f32 %v1313, %v1371
        %1373 = vdwg.mxu0
        %v1374 = vand.u32 %v392, 4294901760
        %1375 = vmatpush.msra.mxu0 %v1374
        %v1376 = vand.u32 %v391, 4294901760
        %1377 = vmatpush.msra.mxu0 %v1376
        %v1378 = vand.u32 %v390, 4294901760
        %1379 = vmatpush.msra.mxu0 %v1378
        %v1380 = vand.u32 %v389, 4294901760
        %1381 = vmatpush.msra.mxu0 %v1380
        %v1382 = vand.u32 %v388, 4294901760
        %1383 = vmatpush.msra.mxu0 %v1382
        %v1384 = vand.u32 %v387, 4294901760
        %1385 = vmatpush.msra.mxu0 %v1384
        %v1386 = vand.u32 %v386, 4294901760
        %1387 = vmatpush.msra.mxu0 %v1386
        %v1388 = vand.u32 %v385, 4294901760
        %1389 = vmatpush.msra.mxu0 %v1388
        %v1390 = vand.u32 %v384, 4294901760
        %1391 = vmatpush.msra.mxu0 %v1390
        %v1392 = vand.u32 %v383, 4294901760
        %1393 = vmatpush.msra.mxu0 %v1392
        %v1394 = vand.u32 %v382, 4294901760
        %1395 = vmatpush.msra.mxu0 %v1394
        %v1396 = vand.u32 %v381, 4294901760
        %1397 = vmatpush.msra.mxu0 %v1396
        %v1398 = vand.u32 %v380, 4294901760
        %1399 = vmatpush.msra.mxu0 %v1398
        %v1400 = vand.u32 %v379, 4294901760
        %1401 = vmatpush.msra.mxu0 %v1400
        %v1402 = vand.u32 %v378, 4294901760
        %1403 = vmatpush.msra.mxu0 %v1402
        %v1404 = vand.u32 %v377, 4294901760
        %1405 = vmatpush.msra.mxu0 %v1404
        %v1406 = vand.u32 %v1157, 4294901760
        %v1407 = vsub.f32 %v1157, %v1406
        %v1408 = vand.u32 %v1407, 4294901760
        %1409 = vmatmul.f32.gmra.mxu0 %v1408
        %v1410 = vpop.f32.mrf.mxu0
        %v1411 = vadd.f32 %v1367, %v1410
        %v1412 = vand.u32 %v1159, 4294901760
        %v1413 = vsub.f32 %v1159, %v1412
        %v1414 = vand.u32 %v1413, 4294901760
        %1415 = vmatmul.f32.gmra.mxu0 %v1414
        %v1416 = vpop.f32.mrf.mxu0
        %v1417 = vadd.f32 %v1372, %v1416
        %1418 = vdwg.mxu0
        %v1419 = vand.u32 %v392, 4294901760
        %v1420 = vsub.f32 %v392, %v1419
        %v1421 = vand.u32 %v1420, 4294901760
        %1422 = vmatpush.msra.mxu0 %v1421
        %v1423 = vand.u32 %v391, 4294901760
        %v1424 = vsub.f32 %v391, %v1423
        %v1425 = vand.u32 %v1424, 4294901760
        %1426 = vmatpush.msra.mxu0 %v1425
        %v1427 = vand.u32 %v390, 4294901760
        %v1428 = vsub.f32 %v390, %v1427
        %v1429 = vand.u32 %v1428, 4294901760
        %1430 = vmatpush.msra.mxu0 %v1429
        %v1431 = vand.u32 %v389, 4294901760
        %v1432 = vsub.f32 %v389, %v1431
        %v1433 = vand.u32 %v1432, 4294901760
        %1434 = vmatpush.msra.mxu0 %v1433
        %v1435 = vand.u32 %v388, 4294901760
        %v1436 = vsub.f32 %v388, %v1435
        %v1437 = vand.u32 %v1436, 4294901760
        %1438 = vmatpush.msra.mxu0 %v1437
        %v1439 = vand.u32 %v387, 4294901760
        %v1440 = vsub.f32 %v387, %v1439
        %v1441 = vand.u32 %v1440, 4294901760
        %1442 = vmatpush.msra.mxu0 %v1441
        %v1443 = vand.u32 %v386, 4294901760
        %v1444 = vsub.f32 %v386, %v1443
        %v1445 = vand.u32 %v1444, 4294901760
        %1446 = vmatpush.msra.mxu0 %v1445
        %v1447 = vand.u32 %v385, 4294901760
        %v1448 = vsub.f32 %v385, %v1447
        %v1449 = vand.u32 %v1448, 4294901760
        %1450 = vmatpush.msra.mxu0 %v1449
        %v1451 = vand.u32 %v384, 4294901760
        %v1452 = vsub.f32 %v384, %v1451
        %v1453 = vand.u32 %v1452, 4294901760
        %1454 = vmatpush.msra.mxu0 %v1453
        %v1455 = vand.u32 %v383, 4294901760
        %v1456 = vsub.f32 %v383, %v1455
        %v1457 = vand.u32 %v1456, 4294901760
        %1458 = vmatpush.msra.mxu0 %v1457
        %v1459 = vand.u32 %v382, 4294901760
        %v1460 = vsub.f32 %v382, %v1459
        %v1461 = vand.u32 %v1460, 4294901760
        %1462 = vmatpush.msra.mxu0 %v1461
        %v1463 = vand.u32 %v381, 4294901760
        %v1464 = vsub.f32 %v381, %v1463
        %v1465 = vand.u32 %v1464, 4294901760
        %1466 = vmatpush.msra.mxu0 %v1465
        %v1467 = vand.u32 %v380, 4294901760
        %v1468 = vsub.f32 %v380, %v1467
        %v1469 = vand.u32 %v1468, 4294901760
        %1470 = vmatpush.msra.mxu0 %v1469
        %v1471 = vand.u32 %v379, 4294901760
        %v1472 = vsub.f32 %v379, %v1471
        %v1473 = vand.u32 %v1472, 4294901760
        %1474 = vmatpush.msra.mxu0 %v1473
        %v1475 = vand.u32 %v378, 4294901760
        %v1476 = vsub.f32 %v378, %v1475
        %v1477 = vand.u32 %v1476, 4294901760
        %1478 = vmatpush.msra.mxu0 %v1477
        %v1479 = vand.u32 %v377, 4294901760
        %v1480 = vsub.f32 %v377, %v1479
        %v1481 = vand.u32 %v1480, 4294901760
        %1482 = vmatpush.msra.mxu0 %v1481
        %v1483 = vand.u32 %v1157, 4294901760
        %1484 = vmatmul.f32.gmra.mxu0 %v1483
        %v1485 = vpop.f32.mrf.mxu0
        %v1486 = vadd.f32 %v1411, %v1485
        %v1487 = vand.u32 %v1159, 4294901760
        %1488 = vmatmul.f32.gmra.mxu0 %v1487
        %v1489 = vpop.f32.mrf.mxu0
        %v1490 = vadd.f32 %v1417, %v1489
        %1491 = vdwg.mxu0
        %v1492 = vand.u32 %v392, 4294901760
        %1493 = vmatpush.msra.mxu0 %v1492
        %v1494 = vand.u32 %v391, 4294901760
        %1495 = vmatpush.msra.mxu0 %v1494
        %v1496 = vand.u32 %v390, 4294901760
        %1497 = vmatpush.msra.mxu0 %v1496
        %v1498 = vand.u32 %v389, 4294901760
        %1499 = vmatpush.msra.mxu0 %v1498
        %v1500 = vand.u32 %v388, 4294901760
        %1501 = vmatpush.msra.mxu0 %v1500
        %v1502 = vand.u32 %v387, 4294901760
        %1503 = vmatpush.msra.mxu0 %v1502
        %v1504 = vand.u32 %v386, 4294901760
        %1505 = vmatpush.msra.mxu0 %v1504
        %v1506 = vand.u32 %v385, 4294901760
        %1507 = vmatpush.msra.mxu0 %v1506
        %v1508 = vand.u32 %v384, 4294901760
        %1509 = vmatpush.msra.mxu0 %v1508
        %v1510 = vand.u32 %v383, 4294901760
        %1511 = vmatpush.msra.mxu0 %v1510
        %v1512 = vand.u32 %v382, 4294901760
        %1513 = vmatpush.msra.mxu0 %v1512
        %v1514 = vand.u32 %v381, 4294901760
        %1515 = vmatpush.msra.mxu0 %v1514
        %v1516 = vand.u32 %v380, 4294901760
        %1517 = vmatpush.msra.mxu0 %v1516
        %v1518 = vand.u32 %v379, 4294901760
        %1519 = vmatpush.msra.mxu0 %v1518
        %v1520 = vand.u32 %v378, 4294901760
        %1521 = vmatpush.msra.mxu0 %v1520
        %v1522 = vand.u32 %v377, 4294901760
        %1523 = vmatpush.msra.mxu0 %v1522
        %v1524 = vand.u32 %v1157, 4294901760
        %1525 = vmatmul.f32.gmra.mxu0 %v1524
        %v1526 = vpop.f32.mrf.mxu0
        %v1527 = vadd.f32 %v1486, %v1526
        %v1528 = vand.u32 %v1159, 4294901760
        %1529 = vmatmul.f32.gmra.mxu0 %v1528
        %v1530 = vpop.f32.mrf.mxu0
        %v1531 = vadd.f32 %v1490, %v1530
        %1532 = vdwg.mxu0
        %v1533 = vand.u32 %v408, 4294901760
        %1534 = vmatpush.msra.mxu0 %v1533
        %v1535 = vand.u32 %v407, 4294901760
        %1536 = vmatpush.msra.mxu0 %v1535
        %v1537 = vand.u32 %v406, 4294901760
        %1538 = vmatpush.msra.mxu0 %v1537
        %v1539 = vand.u32 %v405, 4294901760
        %1540 = vmatpush.msra.mxu0 %v1539
        %v1541 = vand.u32 %v404, 4294901760
        %1542 = vmatpush.msra.mxu0 %v1541
        %v1543 = vand.u32 %v403, 4294901760
        %1544 = vmatpush.msra.mxu0 %v1543
        %v1545 = vand.u32 %v402, 4294901760
        %1546 = vmatpush.msra.mxu0 %v1545
        %v1547 = vand.u32 %v401, 4294901760
        %1548 = vmatpush.msra.mxu0 %v1547
        %v1549 = vand.u32 %v400, 4294901760
        %1550 = vmatpush.msra.mxu0 %v1549
        %v1551 = vand.u32 %v399, 4294901760
        %1552 = vmatpush.msra.mxu0 %v1551
        %v1553 = vand.u32 %v398, 4294901760
        %1554 = vmatpush.msra.mxu0 %v1553
        %v1555 = vand.u32 %v397, 4294901760
        %1556 = vmatpush.msra.mxu0 %v1555
        %v1557 = vand.u32 %v396, 4294901760
        %1558 = vmatpush.msra.mxu0 %v1557
        %v1559 = vand.u32 %v395, 4294901760
        %1560 = vmatpush.msra.mxu0 %v1559
        %v1561 = vand.u32 %v394, 4294901760
        %1562 = vmatpush.msra.mxu0 %v1561
        %v1563 = vand.u32 %v393, 4294901760
        %1564 = vmatpush.msra.mxu0 %v1563
        %v1565 = vand.u32 %v1158, 4294901760
        %v1566 = vsub.f32 %v1158, %v1565
        %v1567 = vand.u32 %v1566, 4294901760
        %v1568 = vsub.f32 %v1566, %v1567
        %v1569 = vand.u32 %v1568, 4294901760
        %1570 = vmatmul.f32.gmra.mxu0 %v1569
        %v1571 = vpop.f32.mrf.mxu0
        %v1572 = vadd.f32 %v1527, %v1571
        %v1573 = vand.u32 %v1160, 4294901760
        %v1574 = vsub.f32 %v1160, %v1573
        %v1575 = vand.u32 %v1574, 4294901760
        %v1576 = vsub.f32 %v1574, %v1575
        %v1577 = vand.u32 %v1576, 4294901760
        %1578 = vmatmul.f32.gmra.mxu0 %v1577
        %v1579 = vpop.f32.mrf.mxu0
        %v1580 = vadd.f32 %v1531, %v1579
        %1581 = vdwg.mxu0
        %v1582 = vand.u32 %v408, 4294901760
        %v1583 = vsub.f32 %v408, %v1582
        %v1584 = vand.u32 %v1583, 4294901760
        %v1585 = vsub.f32 %v1583, %v1584
        %v1586 = vand.u32 %v1585, 4294901760
        %1587 = vmatpush.msra.mxu0 %v1586
        %v1588 = vand.u32 %v407, 4294901760
        %v1589 = vsub.f32 %v407, %v1588
        %v1590 = vand.u32 %v1589, 4294901760
        %v1591 = vsub.f32 %v1589, %v1590
        %v1592 = vand.u32 %v1591, 4294901760
        %1593 = vmatpush.msra.mxu0 %v1592
        %v1594 = vand.u32 %v406, 4294901760
        %v1595 = vsub.f32 %v406, %v1594
        %v1596 = vand.u32 %v1595, 4294901760
        %v1597 = vsub.f32 %v1595, %v1596
        %v1598 = vand.u32 %v1597, 4294901760
        %1599 = vmatpush.msra.mxu0 %v1598
        %v1600 = vand.u32 %v405, 4294901760
        %v1601 = vsub.f32 %v405, %v1600
        %v1602 = vand.u32 %v1601, 4294901760
        %v1603 = vsub.f32 %v1601, %v1602
        %v1604 = vand.u32 %v1603, 4294901760
        %1605 = vmatpush.msra.mxu0 %v1604
        %v1606 = vand.u32 %v404, 4294901760
        %v1607 = vsub.f32 %v404, %v1606
        %v1608 = vand.u32 %v1607, 4294901760
        %v1609 = vsub.f32 %v1607, %v1608
        %v1610 = vand.u32 %v1609, 4294901760
        %1611 = vmatpush.msra.mxu0 %v1610
        %v1612 = vand.u32 %v403, 4294901760
        %v1613 = vsub.f32 %v403, %v1612
        %v1614 = vand.u32 %v1613, 4294901760
        %v1615 = vsub.f32 %v1613, %v1614
        %v1616 = vand.u32 %v1615, 4294901760
        %1617 = vmatpush.msra.mxu0 %v1616
        %v1618 = vand.u32 %v402, 4294901760
        %v1619 = vsub.f32 %v402, %v1618
        %v1620 = vand.u32 %v1619, 4294901760
        %v1621 = vsub.f32 %v1619, %v1620
        %v1622 = vand.u32 %v1621, 4294901760
        %1623 = vmatpush.msra.mxu0 %v1622
        %v1624 = vand.u32 %v401, 4294901760
        %v1625 = vsub.f32 %v401, %v1624
        %v1626 = vand.u32 %v1625, 4294901760
        %v1627 = vsub.f32 %v1625, %v1626
        %v1628 = vand.u32 %v1627, 4294901760
        %1629 = vmatpush.msra.mxu0 %v1628
        %v1630 = vand.u32 %v400, 4294901760
        %v1631 = vsub.f32 %v400, %v1630
        %v1632 = vand.u32 %v1631, 4294901760
        %v1633 = vsub.f32 %v1631, %v1632
        %v1634 = vand.u32 %v1633, 4294901760
        %1635 = vmatpush.msra.mxu0 %v1634
        %v1636 = vand.u32 %v399, 4294901760
        %v1637 = vsub.f32 %v399, %v1636
        %v1638 = vand.u32 %v1637, 4294901760
        %v1639 = vsub.f32 %v1637, %v1638
        %v1640 = vand.u32 %v1639, 4294901760
        %1641 = vmatpush.msra.mxu0 %v1640
        %v1642 = vand.u32 %v398, 4294901760
        %v1643 = vsub.f32 %v398, %v1642
        %v1644 = vand.u32 %v1643, 4294901760
        %v1645 = vsub.f32 %v1643, %v1644
        %v1646 = vand.u32 %v1645, 4294901760
        %1647 = vmatpush.msra.mxu0 %v1646
        %v1648 = vand.u32 %v397, 4294901760
        %v1649 = vsub.f32 %v397, %v1648
        %v1650 = vand.u32 %v1649, 4294901760
        %v1651 = vsub.f32 %v1649, %v1650
        %v1652 = vand.u32 %v1651, 4294901760
        %1653 = vmatpush.msra.mxu0 %v1652
        %v1654 = vand.u32 %v396, 4294901760
        %v1655 = vsub.f32 %v396, %v1654
        %v1656 = vand.u32 %v1655, 4294901760
        %v1657 = vsub.f32 %v1655, %v1656
        %v1658 = vand.u32 %v1657, 4294901760
        %1659 = vmatpush.msra.mxu0 %v1658
        %v1660 = vand.u32 %v395, 4294901760
        %v1661 = vsub.f32 %v395, %v1660
        %v1662 = vand.u32 %v1661, 4294901760
        %v1663 = vsub.f32 %v1661, %v1662
        %v1664 = vand.u32 %v1663, 4294901760
        %1665 = vmatpush.msra.mxu0 %v1664
        %v1666 = vand.u32 %v394, 4294901760
        %v1667 = vsub.f32 %v394, %v1666
        %v1668 = vand.u32 %v1667, 4294901760
        %v1669 = vsub.f32 %v1667, %v1668
        %v1670 = vand.u32 %v1669, 4294901760
        %1671 = vmatpush.msra.mxu0 %v1670
        %v1672 = vand.u32 %v393, 4294901760
        %v1673 = vsub.f32 %v393, %v1672
        %v1674 = vand.u32 %v1673, 4294901760
        %v1675 = vsub.f32 %v1673, %v1674
        %v1676 = vand.u32 %v1675, 4294901760
        %1677 = vmatpush.msra.mxu0 %v1676
        %v1678 = vand.u32 %v1158, 4294901760
        %1679 = vmatmul.f32.gmra.mxu0 %v1678
        %v1680 = vpop.f32.mrf.mxu0
        %v1681 = vadd.f32 %v1572, %v1680
        %v1682 = vand.u32 %v1160, 4294901760
        %1683 = vmatmul.f32.gmra.mxu0 %v1682
        %v1684 = vpop.f32.mrf.mxu0
        %v1685 = vadd.f32 %v1580, %v1684
        %1686 = vdwg.mxu0
        %v1687 = vand.u32 %v408, 4294901760
        %v1688 = vsub.f32 %v408, %v1687
        %1689 = vmatpush.msra.mxu0 %v1688
        %v1690 = vand.u32 %v407, 4294901760
        %v1691 = vsub.f32 %v407, %v1690
        %1692 = vmatpush.msra.mxu0 %v1691
        %v1693 = vand.u32 %v406, 4294901760
        %v1694 = vsub.f32 %v406, %v1693
        %1695 = vmatpush.msra.mxu0 %v1694
        %v1696 = vand.u32 %v405, 4294901760
        %v1697 = vsub.f32 %v405, %v1696
        %1698 = vmatpush.msra.mxu0 %v1697
        %v1699 = vand.u32 %v404, 4294901760
        %v1700 = vsub.f32 %v404, %v1699
        %1701 = vmatpush.msra.mxu0 %v1700
        %v1702 = vand.u32 %v403, 4294901760
        %v1703 = vsub.f32 %v403, %v1702
        %1704 = vmatpush.msra.mxu0 %v1703
        %v1705 = vand.u32 %v402, 4294901760
        %v1706 = vsub.f32 %v402, %v1705
        %1707 = vmatpush.msra.mxu0 %v1706
        %v1708 = vand.u32 %v401, 4294901760
        %v1709 = vsub.f32 %v401, %v1708
        %1710 = vmatpush.msra.mxu0 %v1709
        %v1711 = vand.u32 %v400, 4294901760
        %v1712 = vsub.f32 %v400, %v1711
        %1713 = vmatpush.msra.mxu0 %v1712
        %v1714 = vand.u32 %v399, 4294901760
        %v1715 = vsub.f32 %v399, %v1714
        %1716 = vmatpush.msra.mxu0 %v1715
        %v1717 = vand.u32 %v398, 4294901760
        %v1718 = vsub.f32 %v398, %v1717
        %1719 = vmatpush.msra.mxu0 %v1718
        %v1720 = vand.u32 %v397, 4294901760
        %v1721 = vsub.f32 %v397, %v1720
        %1722 = vmatpush.msra.mxu0 %v1721
        %v1723 = vand.u32 %v396, 4294901760
        %v1724 = vsub.f32 %v396, %v1723
        %1725 = vmatpush.msra.mxu0 %v1724
        %v1726 = vand.u32 %v395, 4294901760
        %v1727 = vsub.f32 %v395, %v1726
        %1728 = vmatpush.msra.mxu0 %v1727
        %v1729 = vand.u32 %v394, 4294901760
        %v1730 = vsub.f32 %v394, %v1729
        %1731 = vmatpush.msra.mxu0 %v1730
        %v1732 = vand.u32 %v393, 4294901760
        %v1733 = vsub.f32 %v393, %v1732
        %1734 = vmatpush.msra.mxu0 %v1733
        %v1735 = vand.u32 %v1158, 4294901760
        %v1736 = vsub.f32 %v1158, %v1735
        %1737 = vmatmul.f32.gmra.mxu0 %v1736
        %v1738 = vpop.f32.mrf.mxu0
        %v1739 = vadd.f32 %v1681, %v1738
        %v1740 = vand.u32 %v1160, 4294901760
        %v1741 = vsub.f32 %v1160, %v1740
        %1742 = vmatmul.f32.gmra.mxu0 %v1741
        %v1743 = vpop.f32.mrf.mxu0
        %v1744 = vadd.f32 %v1685, %v1743
        %1745 = vdwg.mxu0
        %v1746 = vand.u32 %v408, 4294901760
        %1747 = vmatpush.msra.mxu0 %v1746
        %v1748 = vand.u32 %v407, 4294901760
        %1749 = vmatpush.msra.mxu0 %v1748
        %v1750 = vand.u32 %v406, 4294901760
        %1751 = vmatpush.msra.mxu0 %v1750
        %v1752 = vand.u32 %v405, 4294901760
        %1753 = vmatpush.msra.mxu0 %v1752
        %v1754 = vand.u32 %v404, 4294901760
        %1755 = vmatpush.msra.mxu0 %v1754
        %v1756 = vand.u32 %v403, 4294901760
        %1757 = vmatpush.msra.mxu0 %v1756
        %v1758 = vand.u32 %v402, 4294901760
        %1759 = vmatpush.msra.mxu0 %v1758
        %v1760 = vand.u32 %v401, 4294901760
        %1761 = vmatpush.msra.mxu0 %v1760
        %v1762 = vand.u32 %v400, 4294901760
        %1763 = vmatpush.msra.mxu0 %v1762
        %v1764 = vand.u32 %v399, 4294901760
        %1765 = vmatpush.msra.mxu0 %v1764
        %v1766 = vand.u32 %v398, 4294901760
        %1767 = vmatpush.msra.mxu0 %v1766
        %v1768 = vand.u32 %v397, 4294901760
        %1769 = vmatpush.msra.mxu0 %v1768
        %v1770 = vand.u32 %v396, 4294901760
        %1771 = vmatpush.msra.mxu0 %v1770
        %v1772 = vand.u32 %v395, 4294901760
        %1773 = vmatpush.msra.mxu0 %v1772
        %v1774 = vand.u32 %v394, 4294901760
        %1775 = vmatpush.msra.mxu0 %v1774
        %v1776 = vand.u32 %v393, 4294901760
        %1777 = vmatpush.msra.mxu0 %v1776
        %v1778 = vand.u32 %v1158, 4294901760
        %v1779 = vsub.f32 %v1158, %v1778
        %v1780 = vand.u32 %v1779, 4294901760
        %1781 = vmatmul.f32.gmra.mxu0 %v1780
        %v1782 = vpop.f32.mrf.mxu0
        %v1783 = vadd.f32 %v1739, %v1782
        %v1784 = vand.u32 %v1160, 4294901760
        %v1785 = vsub.f32 %v1160, %v1784
        %v1786 = vand.u32 %v1785, 4294901760
        %1787 = vmatmul.f32.gmra.mxu0 %v1786
        %v1788 = vpop.f32.mrf.mxu0
        %v1789 = vadd.f32 %v1744, %v1788
        %1790 = vdwg.mxu0
        %v1791 = vand.u32 %v408, 4294901760
        %v1792 = vsub.f32 %v408, %v1791
        %v1793 = vand.u32 %v1792, 4294901760
        %1794 = vmatpush.msra.mxu0 %v1793
        %v1795 = vand.u32 %v407, 4294901760
        %v1796 = vsub.f32 %v407, %v1795
        %v1797 = vand.u32 %v1796, 4294901760
        %1798 = vmatpush.msra.mxu0 %v1797
        %v1799 = vand.u32 %v406, 4294901760
        %v1800 = vsub.f32 %v406, %v1799
        %v1801 = vand.u32 %v1800, 4294901760
        %1802 = vmatpush.msra.mxu0 %v1801
        %v1803 = vand.u32 %v405, 4294901760
        %v1804 = vsub.f32 %v405, %v1803
        %v1805 = vand.u32 %v1804, 4294901760
        %1806 = vmatpush.msra.mxu0 %v1805
        %v1807 = vand.u32 %v404, 4294901760
        %v1808 = vsub.f32 %v404, %v1807
        %v1809 = vand.u32 %v1808, 4294901760
        %1810 = vmatpush.msra.mxu0 %v1809
        %v1811 = vand.u32 %v403, 4294901760
        %v1812 = vsub.f32 %v403, %v1811
        %v1813 = vand.u32 %v1812, 4294901760
        %1814 = vmatpush.msra.mxu0 %v1813
        %v1815 = vand.u32 %v402, 4294901760
        %v1816 = vsub.f32 %v402, %v1815
        %v1817 = vand.u32 %v1816, 4294901760
        %1818 = vmatpush.msra.mxu0 %v1817
        %v1819 = vand.u32 %v401, 4294901760
        %v1820 = vsub.f32 %v401, %v1819
        %v1821 = vand.u32 %v1820, 4294901760
        %1822 = vmatpush.msra.mxu0 %v1821
        %v1823 = vand.u32 %v400, 4294901760
        %v1824 = vsub.f32 %v400, %v1823
        %v1825 = vand.u32 %v1824, 4294901760
        %1826 = vmatpush.msra.mxu0 %v1825
        %v1827 = vand.u32 %v399, 4294901760
        %v1828 = vsub.f32 %v399, %v1827
        %v1829 = vand.u32 %v1828, 4294901760
        %1830 = vmatpush.msra.mxu0 %v1829
        %v1831 = vand.u32 %v398, 4294901760
        %v1832 = vsub.f32 %v398, %v1831
        %v1833 = vand.u32 %v1832, 4294901760
        %1834 = vmatpush.msra.mxu0 %v1833
        %v1835 = vand.u32 %v397, 4294901760
        %v1836 = vsub.f32 %v397, %v1835
        %v1837 = vand.u32 %v1836, 4294901760
        %1838 = vmatpush.msra.mxu0 %v1837
        %v1839 = vand.u32 %v396, 4294901760
        %v1840 = vsub.f32 %v396, %v1839
        %v1841 = vand.u32 %v1840, 4294901760
        %1842 = vmatpush.msra.mxu0 %v1841
        %v1843 = vand.u32 %v395, 4294901760
        %v1844 = vsub.f32 %v395, %v1843
        %v1845 = vand.u32 %v1844, 4294901760
        %1846 = vmatpush.msra.mxu0 %v1845
        %v1847 = vand.u32 %v394, 4294901760
        %v1848 = vsub.f32 %v394, %v1847
        %v1849 = vand.u32 %v1848, 4294901760
        %1850 = vmatpush.msra.mxu0 %v1849
        %v1851 = vand.u32 %v393, 4294901760
        %v1852 = vsub.f32 %v393, %v1851
        %v1853 = vand.u32 %v1852, 4294901760
        %1854 = vmatpush.msra.mxu0 %v1853
        %v1855 = vand.u32 %v1158, 4294901760
        %1856 = vmatmul.f32.gmra.mxu0 %v1855
        %v1857 = vpop.f32.mrf.mxu0
        %v1858 = vadd.f32 %v1783, %v1857
        %v1859 = vand.u32 %v1160, 4294901760
        %1860 = vmatmul.f32.gmra.mxu0 %v1859
        %v1861 = vpop.f32.mrf.mxu0
        %v1862 = vadd.f32 %v1789, %v1861
        %1863 = vdwg.mxu0
        %v1864 = vand.u32 %v408, 4294901760
        %1865 = vmatpush.msra.mxu0 %v1864
        %v1866 = vand.u32 %v407, 4294901760
        %1867 = vmatpush.msra.mxu0 %v1866
        %v1868 = vand.u32 %v406, 4294901760
        %1869 = vmatpush.msra.mxu0 %v1868
        %v1870 = vand.u32 %v405, 4294901760
        %1871 = vmatpush.msra.mxu0 %v1870
        %v1872 = vand.u32 %v404, 4294901760
        %1873 = vmatpush.msra.mxu0 %v1872
        %v1874 = vand.u32 %v403, 4294901760
        %1875 = vmatpush.msra.mxu0 %v1874
        %v1876 = vand.u32 %v402, 4294901760
        %1877 = vmatpush.msra.mxu0 %v1876
        %v1878 = vand.u32 %v401, 4294901760
        %1879 = vmatpush.msra.mxu0 %v1878
        %v1880 = vand.u32 %v400, 4294901760
        %1881 = vmatpush.msra.mxu0 %v1880
        %v1882 = vand.u32 %v399, 4294901760
        %1883 = vmatpush.msra.mxu0 %v1882
        %v1884 = vand.u32 %v398, 4294901760
        %1885 = vmatpush.msra.mxu0 %v1884
        %v1886 = vand.u32 %v397, 4294901760
        %1887 = vmatpush.msra.mxu0 %v1886
        %v1888 = vand.u32 %v396, 4294901760
        %1889 = vmatpush.msra.mxu0 %v1888
        %v1890 = vand.u32 %v395, 4294901760
        %1891 = vmatpush.msra.mxu0 %v1890
        %v1892 = vand.u32 %v394, 4294901760
        %1893 = vmatpush.msra.mxu0 %v1892
        %v1894 = vand.u32 %v393, 4294901760
        %1895 = vmatpush.msra.mxu0 %v1894
        %v1896 = vand.u32 %v1158, 4294901760
        %1897 = vmatmul.f32.gmra.mxu0 %v1896
        %v1898 = vpop.f32.mrf.mxu0
        %v1899 = vadd.f32 %v1858, %v1898
        %v1900 = vand.u32 %v1160, 4294901760
        %1901 = vmatmul.f32.gmra.mxu0 %v1900
        %v1902 = vpop.f32.mrf.mxu0
        %v1903 = vadd.f32 %v1862, %v1902
        %1904 = vdwg.mxu0
        %v1905 = vrsqrt.pop %v1151
        %v1906 = vmul.f32 %v1905, %v1151
        %v1907 = vmul.f32 %v1906, %v1905
        %v1908 = vmul.f32 0.5, %v1907
        %v1909 = vsub.f32 1.5, %v1908
        %v1910 = vmul.f32 %v1905, %v1909
        %v1911 = vmul.f32 %v1151, %v1910
        %vm1912 = vcmp.eq.f32.partialorder %v1151, inf
        %v1913 = vsel %vm1912, %v1151, %v1911
        %vm1914 = vcmp.eq.f32.partialorder %v1151, 0.0
        %v1915 = vand.u32 %v1151, 2147483648
        %v1916 = vsel %vm1914, %v1915, %v1913
        %v1917 = vrsqrt.pop %v1155
        %v1918 = vmul.f32 %v1917, %v1155
        %v1919 = vmul.f32 %v1918, %v1917
        %v1920 = vmul.f32 0.5, %v1919
        %v1921 = vsub.f32 1.5, %v1920
        %v1922 = vmul.f32 %v1917, %v1921
        %v1923 = vmul.f32 %v1155, %v1922
        %vm1924 = vcmp.eq.f32.partialorder %v1155, inf
        %v1925 = vsel %vm1924, %v1155, %v1923
        %vm1926 = vcmp.eq.f32.partialorder %v1155, 0.0
        %v1927 = vand.u32 %v1155, 2147483648
        %v1928 = vsel %vm1926, %v1927, %v1925
        %v1929 = vrsqrt.pop %v1899
        %v1930 = vmul.f32 %v1929, %v1899
        %v1931 = vmul.f32 %v1930, %v1929
        %v1932 = vmul.f32 0.5, %v1931
        %v1933 = vsub.f32 1.5, %v1932
        %v1934 = vmul.f32 %v1929, %v1933
        %v1935 = vmul.f32 %v1899, %v1934
        %vm1936 = vcmp.eq.f32.partialorder %v1899, inf
        %v1937 = vsel %vm1936, %v1899, %v1935
        %vm1938 = vcmp.eq.f32.partialorder %v1899, 0.0
        %v1939 = vand.u32 %v1899, 2147483648
        %v1940 = vsel %vm1938, %v1939, %v1937
        %v1941 = vrsqrt.pop %v1903
        %v1942 = vmul.f32 %v1941, %v1903
        %v1943 = vmul.f32 %v1942, %v1941
        %v1944 = vmul.f32 0.5, %v1943
        %v1945 = vsub.f32 1.5, %v1944
        %v1946 = vmul.f32 %v1941, %v1945
        %v1947 = vmul.f32 %v1903, %v1946
        %vm1948 = vcmp.eq.f32.partialorder %v1903, inf
        %v1949 = vsel %vm1948, %v1903, %v1947
        %vm1950 = vcmp.eq.f32.partialorder %v1903, 0.0
        %v1951 = vand.u32 %v1903, 2147483648
        %v1952 = vsel %vm1950, %v1951, %v1949
        %v1953 = vadd.f32 %v1940, 1e-10
        %v1954 = vadd.f32 %v1952, 1e-10
        %v1955 = vrcp.pop %v1953
        %v1956 = vmul.f32 %v1953, %v1955
        %v1957 = vsub.f32 1.0, %v1956
        %v1958 = vmul.f32 %v1955, %v1957
        %v1959 = vadd.f32 %v1955, %v1958
        %vm1960 = vweird.f32 %v1953
        %vm1961 = vweird.f32 %v1955
        %vm1962 = vmor %vm1960, %vm1961
        %v1963 = vsel %vm1962, %v1955, %v1959
        %v1964 = vand.u32 2147483647, %v1953
        %vm1965 = vcmp.eq.f32.partialorder %v1964, 8.507059e+37
        %v1966 = vand.u32 %v1953, 2147483648
        %v1967 = vor.u32 1.1754944e-38, %v1966
        %v1968 = vsel %vm1965, %v1967, %v1963
        %v1969 = vmul.f32 %v1916, %v1968
        %v1970 = vrcp.pop %v1954
        %v1971 = vmul.f32 %v1954, %v1970
        %v1972 = vsub.f32 1.0, %v1971
        %v1973 = vmul.f32 %v1970, %v1972
        %v1974 = vadd.f32 %v1970, %v1973
        %vm1975 = vweird.f32 %v1954
        %vm1976 = vweird.f32 %v1970
        %vm1977 = vmor %vm1975, %vm1976
        %v1978 = vsel %vm1977, %v1970, %v1974
        %v1979 = vand.u32 2147483647, %v1954
        %vm1980 = vcmp.eq.f32.partialorder %v1979, 8.507059e+37
        %v1981 = vand.u32 %v1954, 2147483648
        %v1982 = vor.u32 1.1754944e-38, %v1981
        %v1983 = vsel %vm1980, %v1982, %v1978
        %v1984 = vmul.f32 %v1928, %v1983
        %v1985 = vmax.f32 %v1969, 0.0
        %v1986 = vmax.f32 %v1984, 0.0
        %v1987 = vmin.f32 %v1985, 1.0
        %v1988 = vmin.f32 %v1986, 1.0
        %v1989 = vld [vmem:[%s3] sm:$0xff]
        %v1990 = vld [vmem:[%s3 + $0x8] sm:$0xff]
        %v1991 = vld [vmem:[%s3 + $0x10] sm:$0xff]
        %v1992 = vld [vmem:[%s3 + $0x18] sm:$0xff]
        %v1993 = vld [vmem:[%s3 + $0x20] sm:$0xff]
        %v1994 = vld [vmem:[%s3 + $0x28] sm:$0xff]
        %v1995 = vld [vmem:[%s3 + $0x30] sm:$0xff]
        %v1996 = vld [vmem:[%s3 + $0x38] sm:$0xff]
        %v1997 = vld [vmem:[%s3 + $0x40] sm:$0xff]
        %v1998 = vld [vmem:[%s3 + $0x48] sm:$0xff]
        %v1999 = vld [vmem:[%s3 + $0x50] sm:$0xff]
        %v2000 = vld [vmem:[%s3 + $0x58] sm:$0xff]
        %v2001 = vld [vmem:[%s3 + $0x60] sm:$0xff]
        %v2002 = vld [vmem:[%s3 + $0x68] sm:$0xff]
        %v2003 = vld [vmem:[%s3 + $0x70] sm:$0xff]
        %v2004 = vld [vmem:[%s3 + $0x78] sm:$0xff]
        %v2005 = vand.u32 %v2004, 4294901760
        %2006 = vmatpush.msra.mxu0 %v2005
        %v2007 = vand.u32 %v2003, 4294901760
        %2008 = vmatpush.msra.mxu0 %v2007
        %v2009 = vand.u32 %v2002, 4294901760
        %2010 = vmatpush.msra.mxu0 %v2009
        %v2011 = vand.u32 %v2001, 4294901760
        %2012 = vmatpush.msra.mxu0 %v2011
        %v2013 = vand.u32 %v2000, 4294901760
        %2014 = vmatpush.msra.mxu0 %v2013
        %v2015 = vand.u32 %v1999, 4294901760
        %2016 = vmatpush.msra.mxu0 %v2015
        %v2017 = vand.u32 %v1998, 4294901760
        %2018 = vmatpush.msra.mxu0 %v2017
        %v2019 = vand.u32 %v1997, 4294901760
        %2020 = vmatpush.msra.mxu0 %v2019
        %v2021 = vand.u32 %v1996, 4294901760
        %2022 = vmatpush.msra.mxu0 %v2021
        %v2023 = vand.u32 %v1995, 4294901760
        %2024 = vmatpush.msra.mxu0 %v2023
        %v2025 = vand.u32 %v1994, 4294901760
        %2026 = vmatpush.msra.mxu0 %v2025
        %v2027 = vand.u32 %v1993, 4294901760
        %2028 = vmatpush.msra.mxu0 %v2027
        %v2029 = vand.u32 %v1992, 4294901760
        %2030 = vmatpush.msra.mxu0 %v2029
        %v2031 = vand.u32 %v1991, 4294901760
        %2032 = vmatpush.msra.mxu0 %v2031
        %v2033 = vand.u32 %v1990, 4294901760
        %2034 = vmatpush.msra.mxu0 %v2033
        %v2035 = vand.u32 %v1989, 4294901760
        %2036 = vmatpush.msra.mxu0 %v2035
        %v2037 = vand.u32 %v1987, 4294901760
        %v2038 = vsub.f32 %v1987, %v2037
        %v2039 = vand.u32 %v2038, 4294901760
        %v2040 = vsub.f32 %v2038, %v2039
        %v2041 = vand.u32 %v2040, 4294901760
        %2042 = vmatmul.f32.gmra.mxu0 %v2041
        %v2043 = vpop.f32.mrf.mxu0
        %v2044 = vadd.f32 0.0, %v2043
        %v2045 = vand.u32 %v1988, 4294901760
        %v2046 = vsub.f32 %v1988, %v2045
        %v2047 = vand.u32 %v2046, 4294901760
        %v2048 = vsub.f32 %v2046, %v2047
        %v2049 = vand.u32 %v2048, 4294901760
        %2050 = vmatmul.f32.gmra.mxu0 %v2049
        %v2051 = vpop.f32.mrf.mxu0
        %v2052 = vadd.f32 0.0, %v2051
        %2053 = vdwg.mxu0
        %v2054 = vand.u32 %v2004, 4294901760
        %v2055 = vsub.f32 %v2004, %v2054
        %v2056 = vand.u32 %v2055, 4294901760
        %v2057 = vsub.f32 %v2055, %v2056
        %v2058 = vand.u32 %v2057, 4294901760
        %2059 = vmatpush.msra.mxu0 %v2058
        %v2060 = vand.u32 %v2003, 4294901760
        %v2061 = vsub.f32 %v2003, %v2060
        %v2062 = vand.u32 %v2061, 4294901760
        %v2063 = vsub.f32 %v2061, %v2062
        %v2064 = vand.u32 %v2063, 4294901760
        %2065 = vmatpush.msra.mxu0 %v2064
        %v2066 = vand.u32 %v2002, 4294901760
        %v2067 = vsub.f32 %v2002, %v2066
        %v2068 = vand.u32 %v2067, 4294901760
        %v2069 = vsub.f32 %v2067, %v2068
        %v2070 = vand.u32 %v2069, 4294901760
        %2071 = vmatpush.msra.mxu0 %v2070
        %v2072 = vand.u32 %v2001, 4294901760
        %v2073 = vsub.f32 %v2001, %v2072
        %v2074 = vand.u32 %v2073, 4294901760
        %v2075 = vsub.f32 %v2073, %v2074
        %v2076 = vand.u32 %v2075, 4294901760
        %2077 = vmatpush.msra.mxu0 %v2076
        %v2078 = vand.u32 %v2000, 4294901760
        %v2079 = vsub.f32 %v2000, %v2078
        %v2080 = vand.u32 %v2079, 4294901760
        %v2081 = vsub.f32 %v2079, %v2080
        %v2082 = vand.u32 %v2081, 4294901760
        %2083 = vmatpush.msra.mxu0 %v2082
        %v2084 = vand.u32 %v1999, 4294901760
        %v2085 = vsub.f32 %v1999, %v2084
        %v2086 = vand.u32 %v2085, 4294901760
        %v2087 = vsub.f32 %v2085, %v2086
        %v2088 = vand.u32 %v2087, 4294901760
        %2089 = vmatpush.msra.mxu0 %v2088
        %v2090 = vand.u32 %v1998, 4294901760
        %v2091 = vsub.f32 %v1998, %v2090
        %v2092 = vand.u32 %v2091, 4294901760
        %v2093 = vsub.f32 %v2091, %v2092
        %v2094 = vand.u32 %v2093, 4294901760
        %2095 = vmatpush.msra.mxu0 %v2094
        %v2096 = vand.u32 %v1997, 4294901760
        %v2097 = vsub.f32 %v1997, %v2096
        %v2098 = vand.u32 %v2097, 4294901760
        %v2099 = vsub.f32 %v2097, %v2098
        %v2100 = vand.u32 %v2099, 4294901760
        %2101 = vmatpush.msra.mxu0 %v2100
        %v2102 = vand.u32 %v1996, 4294901760
        %v2103 = vsub.f32 %v1996, %v2102
        %v2104 = vand.u32 %v2103, 4294901760
        %v2105 = vsub.f32 %v2103, %v2104
        %v2106 = vand.u32 %v2105, 4294901760
        %2107 = vmatpush.msra.mxu0 %v2106
        %v2108 = vand.u32 %v1995, 4294901760
        %v2109 = vsub.f32 %v1995, %v2108
        %v2110 = vand.u32 %v2109, 4294901760
        %v2111 = vsub.f32 %v2109, %v2110
        %v2112 = vand.u32 %v2111, 4294901760
        %2113 = vmatpush.msra.mxu0 %v2112
        %v2114 = vand.u32 %v1994, 4294901760
        %v2115 = vsub.f32 %v1994, %v2114
        %v2116 = vand.u32 %v2115, 4294901760
        %v2117 = vsub.f32 %v2115, %v2116
        %v2118 = vand.u32 %v2117, 4294901760
        %2119 = vmatpush.msra.mxu0 %v2118
        %v2120 = vand.u32 %v1993, 4294901760
        %v2121 = vsub.f32 %v1993, %v2120
        %v2122 = vand.u32 %v2121, 4294901760
        %v2123 = vsub.f32 %v2121, %v2122
        %v2124 = vand.u32 %v2123, 4294901760
        %2125 = vmatpush.msra.mxu0 %v2124
        %v2126 = vand.u32 %v1992, 4294901760
        %v2127 = vsub.f32 %v1992, %v2126
        %v2128 = vand.u32 %v2127, 4294901760
        %v2129 = vsub.f32 %v2127, %v2128
        %v2130 = vand.u32 %v2129, 4294901760
        %2131 = vmatpush.msra.mxu0 %v2130
        %v2132 = vand.u32 %v1991, 4294901760
        %v2133 = vsub.f32 %v1991, %v2132
        %v2134 = vand.u32 %v2133, 4294901760
        %v2135 = vsub.f32 %v2133, %v2134
        %v2136 = vand.u32 %v2135, 4294901760
        %2137 = vmatpush.msra.mxu0 %v2136
        %v2138 = vand.u32 %v1990, 4294901760
        %v2139 = vsub.f32 %v1990, %v2138
        %v2140 = vand.u32 %v2139, 4294901760
        %v2141 = vsub.f32 %v2139, %v2140
        %v2142 = vand.u32 %v2141, 4294901760
        %2143 = vmatpush.msra.mxu0 %v2142
        %v2144 = vand.u32 %v1989, 4294901760
        %v2145 = vsub.f32 %v1989, %v2144
        %v2146 = vand.u32 %v2145, 4294901760
        %v2147 = vsub.f32 %v2145, %v2146
        %v2148 = vand.u32 %v2147, 4294901760
        %2149 = vmatpush.msra.mxu0 %v2148
        %v2150 = vand.u32 %v1987, 4294901760
        %2151 = vmatmul.f32.gmra.mxu0 %v2150
        %v2152 = vpop.f32.mrf.mxu0
        %v2153 = vadd.f32 %v2044, %v2152
        %v2154 = vand.u32 %v1988, 4294901760
        %2155 = vmatmul.f32.gmra.mxu0 %v2154
        %v2156 = vpop.f32.mrf.mxu0
        %v2157 = vadd.f32 %v2052, %v2156
        %2158 = vdwg.mxu0
        %v2159 = vand.u32 %v2004, 4294901760
        %v2160 = vsub.f32 %v2004, %v2159
        %2161 = vmatpush.msra.mxu0 %v2160
        %v2162 = vand.u32 %v2003, 4294901760
        %v2163 = vsub.f32 %v2003, %v2162
        %2164 = vmatpush.msra.mxu0 %v2163
        %v2165 = vand.u32 %v2002, 4294901760
        %v2166 = vsub.f32 %v2002, %v2165
        %2167 = vmatpush.msra.mxu0 %v2166
        %v2168 = vand.u32 %v2001, 4294901760
        %v2169 = vsub.f32 %v2001, %v2168
        %2170 = vmatpush.msra.mxu0 %v2169
        %v2171 = vand.u32 %v2000, 4294901760
        %v2172 = vsub.f32 %v2000, %v2171
        %2173 = vmatpush.msra.mxu0 %v2172
        %v2174 = vand.u32 %v1999, 4294901760
        %v2175 = vsub.f32 %v1999, %v2174
        %2176 = vmatpush.msra.mxu0 %v2175
        %v2177 = vand.u32 %v1998, 4294901760
        %v2178 = vsub.f32 %v1998, %v2177
        %2179 = vmatpush.msra.mxu0 %v2178
        %v2180 = vand.u32 %v1997, 4294901760
        %v2181 = vsub.f32 %v1997, %v2180
        %2182 = vmatpush.msra.mxu0 %v2181
        %v2183 = vand.u32 %v1996, 4294901760
        %v2184 = vsub.f32 %v1996, %v2183
        %2185 = vmatpush.msra.mxu0 %v2184
        %v2186 = vand.u32 %v1995, 4294901760
        %v2187 = vsub.f32 %v1995, %v2186
        %2188 = vmatpush.msra.mxu0 %v2187
        %v2189 = vand.u32 %v1994, 4294901760
        %v2190 = vsub.f32 %v1994, %v2189
        %2191 = vmatpush.msra.mxu0 %v2190
        %v2192 = vand.u32 %v1993, 4294901760
        %v2193 = vsub.f32 %v1993, %v2192
        %2194 = vmatpush.msra.mxu0 %v2193
        %v2195 = vand.u32 %v1992, 4294901760
        %v2196 = vsub.f32 %v1992, %v2195
        %2197 = vmatpush.msra.mxu0 %v2196
        %v2198 = vand.u32 %v1991, 4294901760
        %v2199 = vsub.f32 %v1991, %v2198
        %2200 = vmatpush.msra.mxu0 %v2199
        %v2201 = vand.u32 %v1990, 4294901760
        %v2202 = vsub.f32 %v1990, %v2201
        %2203 = vmatpush.msra.mxu0 %v2202
        %v2204 = vand.u32 %v1989, 4294901760
        %v2205 = vsub.f32 %v1989, %v2204
        %2206 = vmatpush.msra.mxu0 %v2205
        %v2207 = vand.u32 %v1987, 4294901760
        %v2208 = vsub.f32 %v1987, %v2207
        %2209 = vmatmul.f32.gmra.mxu0 %v2208
        %v2210 = vpop.f32.mrf.mxu0
        %v2211 = vadd.f32 %v2153, %v2210
        %v2212 = vand.u32 %v1988, 4294901760
        %v2213 = vsub.f32 %v1988, %v2212
        %2214 = vmatmul.f32.gmra.mxu0 %v2213
        %v2215 = vpop.f32.mrf.mxu0
        %v2216 = vadd.f32 %v2157, %v2215
        %2217 = vdwg.mxu0
        %v2218 = vand.u32 %v2004, 4294901760
        %2219 = vmatpush.msra.mxu0 %v2218
        %v2220 = vand.u32 %v2003, 4294901760
        %2221 = vmatpush.msra.mxu0 %v2220
        %v2222 = vand.u32 %v2002, 4294901760
        %2223 = vmatpush.msra.mxu0 %v2222
        %v2224 = vand.u32 %v2001, 4294901760
        %2225 = vmatpush.msra.mxu0 %v2224
        %v2226 = vand.u32 %v2000, 4294901760
        %2227 = vmatpush.msra.mxu0 %v2226
        %v2228 = vand.u32 %v1999, 4294901760
        %2229 = vmatpush.msra.mxu0 %v2228
        %v2230 = vand.u32 %v1998, 4294901760
        %2231 = vmatpush.msra.mxu0 %v2230
        %v2232 = vand.u32 %v1997, 4294901760
        %2233 = vmatpush.msra.mxu0 %v2232
        %v2234 = vand.u32 %v1996, 4294901760
        %2235 = vmatpush.msra.mxu0 %v2234
        %v2236 = vand.u32 %v1995, 4294901760
        %2237 = vmatpush.msra.mxu0 %v2236
        %v2238 = vand.u32 %v1994, 4294901760
        %2239 = vmatpush.msra.mxu0 %v2238
        %v2240 = vand.u32 %v1993, 4294901760
        %2241 = vmatpush.msra.mxu0 %v2240
        %v2242 = vand.u32 %v1992, 4294901760
        %2243 = vmatpush.msra.mxu0 %v2242
        %v2244 = vand.u32 %v1991, 4294901760
        %2245 = vmatpush.msra.mxu0 %v2244
        %v2246 = vand.u32 %v1990, 4294901760
        %2247 = vmatpush.msra.mxu0 %v2246
        %v2248 = vand.u32 %v1989, 4294901760
        %2249 = vmatpush.msra.mxu0 %v2248
        %v2250 = vand.u32 %v1987, 4294901760
        %v2251 = vsub.f32 %v1987, %v2250
        %v2252 = vand.u32 %v2251, 4294901760
        %2253 = vmatmul.f32.gmra.mxu0 %v2252
        %v2254 = vpop.f32.mrf.mxu0
        %v2255 = vadd.f32 %v2211, %v2254
        %v2256 = vand.u32 %v1988, 4294901760
        %v2257 = vsub.f32 %v1988, %v2256
        %v2258 = vand.u32 %v2257, 4294901760
        %2259 = vmatmul.f32.gmra.mxu0 %v2258
        %v2260 = vpop.f32.mrf.mxu0
        %v2261 = vadd.f32 %v2216, %v2260
        %2262 = vdwg.mxu0
        %v2263 = vand.u32 %v2004, 4294901760
        %v2264 = vsub.f32 %v2004, %v2263
        %v2265 = vand.u32 %v2264, 4294901760
        %2266 = vmatpush.msra.mxu0 %v2265
        %v2267 = vand.u32 %v2003, 4294901760
        %v2268 = vsub.f32 %v2003, %v2267
        %v2269 = vand.u32 %v2268, 4294901760
        %2270 = vmatpush.msra.mxu0 %v2269
        %v2271 = vand.u32 %v2002, 4294901760
        %v2272 = vsub.f32 %v2002, %v2271
        %v2273 = vand.u32 %v2272, 4294901760
        %2274 = vmatpush.msra.mxu0 %v2273
        %v2275 = vand.u32 %v2001, 4294901760
        %v2276 = vsub.f32 %v2001, %v2275
        %v2277 = vand.u32 %v2276, 4294901760
        %2278 = vmatpush.msra.mxu0 %v2277
        %v2279 = vand.u32 %v2000, 4294901760
        %v2280 = vsub.f32 %v2000, %v2279
        %v2281 = vand.u32 %v2280, 4294901760
        %2282 = vmatpush.msra.mxu0 %v2281
        %v2283 = vand.u32 %v1999, 4294901760
        %v2284 = vsub.f32 %v1999, %v2283
        %v2285 = vand.u32 %v2284, 4294901760
        %2286 = vmatpush.msra.mxu0 %v2285
        %v2287 = vand.u32 %v1998, 4294901760
        %v2288 = vsub.f32 %v1998, %v2287
        %v2289 = vand.u32 %v2288, 4294901760
        %2290 = vmatpush.msra.mxu0 %v2289
        %v2291 = vand.u32 %v1997, 4294901760
        %v2292 = vsub.f32 %v1997, %v2291
        %v2293 = vand.u32 %v2292, 4294901760
        %2294 = vmatpush.msra.mxu0 %v2293
        %v2295 = vand.u32 %v1996, 4294901760
        %v2296 = vsub.f32 %v1996, %v2295
        %v2297 = vand.u32 %v2296, 4294901760
        %2298 = vmatpush.msra.mxu0 %v2297
        %v2299 = vand.u32 %v1995, 4294901760
        %v2300 = vsub.f32 %v1995, %v2299
        %v2301 = vand.u32 %v2300, 4294901760
        %2302 = vmatpush.msra.mxu0 %v2301
        %v2303 = vand.u32 %v1994, 4294901760
        %v2304 = vsub.f32 %v1994, %v2303
        %v2305 = vand.u32 %v2304, 4294901760
        %2306 = vmatpush.msra.mxu0 %v2305
        %v2307 = vand.u32 %v1993, 4294901760
        %v2308 = vsub.f32 %v1993, %v2307
        %v2309 = vand.u32 %v2308, 4294901760
        %2310 = vmatpush.msra.mxu0 %v2309
        %v2311 = vand.u32 %v1992, 4294901760
        %v2312 = vsub.f32 %v1992, %v2311
        %v2313 = vand.u32 %v2312, 4294901760
        %2314 = vmatpush.msra.mxu0 %v2313
        %v2315 = vand.u32 %v1991, 4294901760
        %v2316 = vsub.f32 %v1991, %v2315
        %v2317 = vand.u32 %v2316, 4294901760
        %2318 = vmatpush.msra.mxu0 %v2317
        %v2319 = vand.u32 %v1990, 4294901760
        %v2320 = vsub.f32 %v1990, %v2319
        %v2321 = vand.u32 %v2320, 4294901760
        %2322 = vmatpush.msra.mxu0 %v2321
        %v2323 = vand.u32 %v1989, 4294901760
        %v2324 = vsub.f32 %v1989, %v2323
        %v2325 = vand.u32 %v2324, 4294901760
        %2326 = vmatpush.msra.mxu0 %v2325
        %v2327 = vand.u32 %v1987, 4294901760
        %2328 = vmatmul.f32.gmra.mxu0 %v2327
        %v2329 = vpop.f32.mrf.mxu0
        %v2330 = vadd.f32 %v2255, %v2329
        %v2331 = vand.u32 %v1988, 4294901760
        %2332 = vmatmul.f32.gmra.mxu0 %v2331
        %v2333 = vpop.f32.mrf.mxu0
        %v2334 = vadd.f32 %v2261, %v2333
        %2335 = vdwg.mxu0
        %v2336 = vand.u32 %v2004, 4294901760
        %2337 = vmatpush.msra.mxu0 %v2336
        %v2338 = vand.u32 %v2003, 4294901760
        %2339 = vmatpush.msra.mxu0 %v2338
        %v2340 = vand.u32 %v2002, 4294901760
        %2341 = vmatpush.msra.mxu0 %v2340
        %v2342 = vand.u32 %v2001, 4294901760
        %2343 = vmatpush.msra.mxu0 %v2342
        %v2344 = vand.u32 %v2000, 4294901760
        %2345 = vmatpush.msra.mxu0 %v2344
        %v2346 = vand.u32 %v1999, 4294901760
        %2347 = vmatpush.msra.mxu0 %v2346
        %v2348 = vand.u32 %v1998, 4294901760
        %2349 = vmatpush.msra.mxu0 %v2348
        %v2350 = vand.u32 %v1997, 4294901760
        %2351 = vmatpush.msra.mxu0 %v2350
        %v2352 = vand.u32 %v1996, 4294901760
        %2353 = vmatpush.msra.mxu0 %v2352
        %v2354 = vand.u32 %v1995, 4294901760
        %2355 = vmatpush.msra.mxu0 %v2354
        %v2356 = vand.u32 %v1994, 4294901760
        %2357 = vmatpush.msra.mxu0 %v2356
        %v2358 = vand.u32 %v1993, 4294901760
        %2359 = vmatpush.msra.mxu0 %v2358
        %v2360 = vand.u32 %v1992, 4294901760
        %2361 = vmatpush.msra.mxu0 %v2360
        %v2362 = vand.u32 %v1991, 4294901760
        %2363 = vmatpush.msra.mxu0 %v2362
        %v2364 = vand.u32 %v1990, 4294901760
        %2365 = vmatpush.msra.mxu0 %v2364
        %v2366 = vand.u32 %v1989, 4294901760
        %2367 = vmatpush.msra.mxu0 %v2366
        %v2368 = vand.u32 %v1987, 4294901760
        %2369 = vmatmul.f32.gmra.mxu0 %v2368
        %v2370 = vpop.f32.mrf.mxu0
        %v2371 = vadd.f32 %v2330, %v2370
        %v2372 = vand.u32 %v1988, 4294901760
        %2373 = vmatmul.f32.gmra.mxu0 %v2372
        %v2374 = vpop.f32.mrf.mxu0
        %v2375 = vadd.f32 %v2334, %v2374
        %2376 = vdwg.mxu0
        %v2377 = vmax.f32 %v2371, 0.0
        %v2378 = vmax.f32 %v2375, 0.0
        %v2379 = vmax.f32 %v2377, 1e-30
        %v2380 = vmax.f32 %v2378, 1e-30
        %vm2381 = vcmp.gt.f32.partialorder %v2377, 0.0
        %vm2382 = vcmp.gt.f32.partialorder %v2378, 0.0
        %v2383 = vlog2.pop %v2379
        %v2384 = vmul.f32 %v2383, 0.6931472
        %v2385 = vlog2.pop %v2380
        %v2386 = vmul.f32 %v2385, 0.6931472
        %v2387 = vmul.f32 %v2384, 0.6
        %v2388 = vmul.f32 %v2386, 0.6
        %v2389 = vmul.f32 %v2387, 1.442695
        %v2390 = vpow.pop %v2389
        %v2391 = vmul.f32 %v2388, 1.442695
        %v2392 = vpow.pop %v2391
        %v2393 = vsel %vm2381, %v2390, 0.0
        %v2394 = vsel %vm2382, %v2392, 0.0
        %v2395 = vld [vmem:[%s340] sm:$0xff]
        %v2396 = vld [vmem:[%s340 + $0x8] sm:$0xff]
        %v2397 = vmax.f32 %v2395, 1e-12
        %v2398 = vmax.f32 %v2396, 1e-12
        %v2399 = vlog2.pop %v2397
        %v2400 = vmul.f32 %v2399, 0.6931472
        %v2401 = vlog2.pop %v2398
        %v2402 = vmul.f32 %v2401, 0.6931472
        %v2403 = vmul.f32 %v2400, 0.6
        %v2404 = vmul.f32 %v2402, 0.6
        %v2405 = vmul.f32 %v2403, 1.442695
        %v2406 = vpow.pop %v2405
        %v2407 = vmul.f32 %v2404, 1.442695
        %v2408 = vpow.pop %v2407
        %v2409 = vsub.f32 %v2393, %v2406
        %v2410 = vsub.f32 %v2394, %v2408
        %v2411 = vmul.f32 %v2409, %v2409
        %v2412 = vmul.f32 %v2410, %v2410
        %v2413 = vmax.f32 %v2411, 1e-13
        %v2414 = vmax.f32 %v2412, 1e-13
        %v2415 = vlaneseq
        %v2416 = vshrl.u32 %v2415, 7
        %v2417 = vadd.s32 %v2416, 8
        %s2418 = smul.u32 %s23, 16
        %v2419 = vstv %s2418
        %v2420 = vadd.s32 %v2416, %v2419
        %v2421 = vadd.s32 %v2417, %v2419
        %vm2422 = vcmp.lt.s32.totalorder %v2420, 66
        %vm2423 = vcmp.lt.s32.totalorder %v2421, 66
        %v2424 = vsel %vm2422, %v2413, 0.0
        %v2425 = vsel %vm2423, %v2414, 0.0
        %vm2426 = vcmask 261120
        %v2427 = vsel %vm2426, %v2424, 0.0
        %v2428 = vsel %vm2426, %v2425, 0.0
        %v2429 = vadd.f32 %v2427, %v2428
        %2430 = vadd.xlane.f32.xlu0 %v2429
        %v2431 = vpop.xlane.xlu0 %2430
        %v2432 = vrot.slane %v2431, 4
        %v2433 = vadd.f32 %v2431, %v2432
        %v2434 = vrot.slane %v2433, 2
        %v2435 = vadd.f32 %v2433, %v2434
        %v2436 = vrot.slane %v2435, 1
        %v2437 = vadd.f32 %v2435, %v2436
        %s2438 = vtos %v2437
        %s2439 = sadd.f32 %s2438, 0.0
        %v2440 = vstv %s2439
        %2441 = vst [vmem:[%s331] sm:$0xff] %v2440
        %s2442 = sand.u32 %s151, 1
        %s2443 = scalar_lea.sflag [#allocation4], %s2442
        %s2444 = sand.u32 %s151, 1
        %s2445 = smul.addr %s2444, 8
        %s2446 = scalar_lea.vmem [#allocation7], %s2445
        // Predicated region
        $region49: #{tpu_custom_call.1} parent=39 // pred_check
          %p2447 = pneg %p161
        $region50: #{tpu_custom_call.1} parent=39 // pred_check_branch
          %2449 = sbr.rel (%p2447) target = $region52
        $region51: #{tpu_custom_call.1} parent=39 // pred_region
          %2451 = vsyncadd %s2443, 0
          %s2452 = smul.addr %s23, 8
          %s2453 = scalar_lea.hbm %s5, %s2452
          %s2455 = sshll.u32 %s2446, 4
          %s2456 = int_to_ptr.vmem [resolvable:$true] %s2455
          %s2457 = sshll.u32 %s2453, 4
          %s2458 = int_to_ptr.hbm [resolvable:$true] %s2457
          %2460 = dma.vmem_to_hbm [thread:$0]  %s2456, 128, %s2458, %s2443
        $region52: #{tpu_custom_call.1} parent=39 // pred_fallthru
          _
      $region40: #{tpu_custom_call.1} parent=5 // pred_fallthru
        _
      %p2461 = scmp.le.s32.totalorder 2, %s18
      // Predicated region
      $region53: #{tpu_custom_call.1} parent=5 // pred_check
        %p2462 = pneg %p2461
      $region54: #{tpu_custom_call.1} parent=5 // pred_check_branch
        %2464 = sbr.rel (%p2462) target = $region56
      $region55: #{tpu_custom_call.1} parent=5 // pred_region
        %s2465 = ssub.s32 %s18, 2
        // Predicated region
        $region57: #{tpu_custom_call.1} parent=55 // pred_check
          %p2466 = pneg %p167
        $region58: #{tpu_custom_call.1} parent=55 // pred_check_branch
          %2468 = sbr.rel (%p2466) target = $region60
        $region59: #{tpu_custom_call.1} parent=55 // pred_region
          %s2469 = sand.u32 %s152, 1
          %s2470 = scalar_lea.sflag [#allocation4], %s2469
          %s2471 = sand.u32 %s152, 1
          %s2472 = smul.addr %s2471, 8
          %s2473 = scalar_lea.vmem [#allocation7], %s2472
          %2475 = dma.done %s2470, 128
        $region60: #{tpu_custom_call.1} parent=55 // pred_fallthru
          _
      $region56: #{tpu_custom_call.1} parent=5 // pred_fallthru
        _
    $region6: #{tpu_custom_call.1} parent=1 // loop_footer
      %s22 = sadd.s32 1, %s18
    $region7: #{tpu_custom_call.1} parent=1 // loop_footer_branch
      %17 = sbr.rel target = $region3
    $region8: #{tpu_custom_call.1} parent=1 // loop_exit
      _
    %2476 = vsyncpa [#allocation3], 1
    %s2477 = scalar_lea.sflag [#allocation3], 1
    %2478 = vsyncpa %s2477, 1
    %2479 = vsyncpa [#allocation6], 1
    %2480 = vsyncpa [#allocation4], 1
    %s2481 = scalar_lea.sflag [#allocation4], 1
    %2482 = vsyncpa %s2481, 1

</llo_original>
